<compile_context>
chip_gen: v6e
topology: v6e:2x2x1
jax: 0.10.0
libtpu: 0.0.40
codegen_flags: <defaults>
</compile_context>

<pallas_src>
import functools
import math

import numpy as np
import jax
import jax.numpy as jnp
from jax import lax
from jax.experimental import pallas as pl
from jax.experimental.pallas import tpu as pltpu


# ----------------------------------------------------------------------------
# Host-side helpers (sincos positional embedding, identical to the PyTorch code)
# ----------------------------------------------------------------------------
def get_1d_sincos_pos_embed_from_grid(embed_dim, pos):
    assert embed_dim % 2 == 0
    omega = np.arange(embed_dim // 2, dtype=np.float64)
    omega /= embed_dim / 2.0
    omega = 1.0 / 10000 ** omega
    pos = pos.reshape(-1)
    out = np.einsum("m,d->md", pos, omega)
    return np.concatenate([np.sin(out), np.cos(out)], axis=1)


def get_2d_sincos_pos_embed(embed_dim, grid_size):
    grid_h = np.arange(grid_size, dtype=np.float32)
    grid_w = np.arange(grid_size, dtype=np.float32)
    grid = np.meshgrid(grid_w, grid_h)
    grid = np.stack(grid, axis=0).reshape([2, 1, grid_size, grid_size])
    emb_h = get_1d_sincos_pos_embed_from_grid(embed_dim // 2, grid[0])
    emb_w = get_1d_sincos_pos_embed_from_grid(embed_dim // 2, grid[1])
    return np.concatenate([emb_h, emb_w], axis=1)


# ----------------------------------------------------------------------------
# Math helpers (work on traced values, used both inside kernels and in the
# pure-JAX reference so the two paths share the exact same formulas).
# ----------------------------------------------------------------------------
def _silu(x):
    return x * jax.nn.sigmoid(x)


def _gelu_tanh(x):
    c = 0.7978845608028654  # sqrt(2/pi)
    return 0.5 * x * (1.0 + jnp.tanh(c * (x + 0.044715 * x * x * x)))


def _rmsnorm(x, g, scale):
    # F.normalize(x, dim=-1) * sqrt(dim) * g   (eps = 1e-12)
    n = jnp.sqrt(jnp.sum(x * x, axis=-1, keepdims=True))
    return x / jnp.maximum(n, 1e-12) * scale * g


def _softmax_last(x):
    m = jnp.max(x, axis=-1, keepdims=True)
    e = jnp.exp(x - m)
    return e / jnp.sum(e, axis=-1, keepdims=True)


# ----------------------------------------------------------------------------
# Kernel 1: conditioning  c = TimestepEmbedder(t) + TimestepEmbedder(r) + Embed(y)
#   - processes a whole batch tile per grid step (no per-row grid!)
#   - embedding table is VMEM-resident; gather is a one-hot MXU matmul
# ----------------------------------------------------------------------------
def _cond_kernel(t_ref, r_ref, y_ref, freqs_ref,
                 t_w1, t_b1, t_w2, t_b2,
                 r_w1, r_b1, r_w2, r_b2,
                 table_ref, c_ref):
    half = freqs_ref.shape[1]
    freqs = freqs_ref[...]                                     # (1, half)

    def timestep_mlp(tv, w1, b1, w2, b2):
        # torch: raw = cat([cos(args), sin(args)]); raw @ W1^T split to avoid concat.
        args = (tv * 1000.0) * freqs                           # (TB, half)
        cos_a = jnp.cos(args)
        sin_a = jnp.sin(args)
        h = (jnp.dot(cos_a, w1[0:half, :], preferred_element_type=jnp.float32)
             + jnp.dot(sin_a, w1[half:, :], preferred_element_type=jnp.float32)
             + b1[...])
        h = _silu(h)
        return jnp.dot(h, w2[...], preferred_element_type=jnp.float32) + b2[...]

    t_emb = timestep_mlp(t_ref[...], t_w1, t_b1, t_w2, t_b2)
    r_emb = timestep_mlp(r_ref[...], r_w1, r_b1, r_w2, r_b2)

    # Label gather for the whole tile: one-hot (TB, V) @ table (V, D) on the MXU.
    V = table_ref.shape[0]
    TB = y_ref.shape[0]
    classes = lax.broadcasted_iota(jnp.int32, (TB, V), 1)
    onehot = (y_ref[...] == classes).astype(jnp.float32)
    y_emb = jnp.dot(onehot, table_ref[...], preferred_element_type=jnp.float32)

    c_ref[...] = t_emb + r_emb + y_emb


def conditioning_forward(t, r, y, params):
    B = t.shape[0]
    D = params["t_w1"].shape[1]
    nfreq = params["t_w1"].shape[0]
    half = nfreq // 2
    V = params["emb_table"].shape[0]

    # Batch tile: whole batch if small, otherwise a sublane-aligned tile.
    TB = B if (B < 8 or B % 8 != 0) else min(B, 256)
    if B % TB != 0:
        TB = B

    freqs = np.exp(-math.log(10000.0) * np.arange(half, dtype=np.float32) / half)
    freqs = jnp.asarray(freqs, dtype=jnp.float32).reshape(1, half)

    t2 = t.astype(jnp.float32).reshape(B, 1)
    r2 = r.astype(jnp.float32).reshape(B, 1)
    y2 = y.astype(jnp.int32).reshape(B, 1)

    row = lambda i: (i, 0)
    full = lambda i: (0, 0)

    grid_spec = pltpu.PrefetchScalarGridSpec(
        num_scalar_prefetch=0,
        grid=(B // TB,),
        in_specs=[
            pl.BlockSpec((TB, 1), row),            # t
            pl.BlockSpec((TB, 1), row),            # r
            pl.BlockSpec((TB, 1), row),            # labels
            pl.BlockSpec((1, half), full),         # freqs (resident)
            pl.BlockSpec((nfreq, D), full),        # t MLP
            pl.BlockSpec((1, D), full),
            pl.BlockSpec((D, D), full),
            pl.BlockSpec((1, D), full),
            pl.BlockSpec((nfreq, D), full),        # r MLP
            pl.BlockSpec((1, D), full),
            pl.BlockSpec((D, D), full),
            pl.BlockSpec((1, D), full),
            pl.BlockSpec((V, D), full),            # embedding table (VMEM resident)
        ],
        out_specs=pl.BlockSpec((TB, D), row),
    )
    return pl.pallas_call(
        _cond_kernel,
        out_shape=jax.ShapeDtypeStruct((B, D), jnp.float32),
        grid_spec=grid_spec,
        compiler_params=pltpu.CompilerParams(dimension_semantics=("parallel",)),
    )(t2, r2, y2, freqs,
      params["t_w1"], params["t_b1"], params["t_w2"], params["t_b2"],
      params["r_w1"], params["r_b1"], params["r_w2"], params["r_b2"],
      params["emb_table"])


# ----------------------------------------------------------------------------
# Kernel 2: patch embedding projection + positional embedding
# ----------------------------------------------------------------------------
def _patch_embed_kernel(xp_ref, w_ref, b_ref, pos_ref, out_ref):
    xp = xp_ref[0]                                             # (N, C*p*p)
    y = jnp.dot(xp, w_ref[...], preferred_element_type=jnp.float32)
    out_ref[...] = (y + b_ref[...] + pos_ref[...])[None]


def patch_embed_forward(x, params):
    B, C, H, W = x.shape
    p = params["patch_size"]
    D = params["patch_w"].shape[1]
    h, w = H // p, W // p
    N, P = h * w, C * p * p

    # Non-overlapping patch extraction: layout plumbing, done in XLA.
    xp = x.reshape(B, C, h, p, w, p)
    xp = jnp.transpose(xp, (0, 2, 4, 1, 3, 5)).reshape(B, N, P)

    grid_spec = pltpu.PrefetchScalarGridSpec(
        num_scalar_prefetch=0,
        grid=(B,),
        in_specs=[
            pl.BlockSpec((1, N, P), lambda b: (b, 0, 0)),
            pl.BlockSpec((P, D), lambda b: (0, 0)),
            pl.BlockSpec((1, D), lambda b: (0, 0)),
            pl.BlockSpec((N, D), lambda b: (0, 0)),
        ],
        out_specs=pl.BlockSpec((1, N, D), lambda b: (b, 0, 0)),
    )
    return pl.pallas_call(
        _patch_embed_kernel,
        out_shape=jax.ShapeDtypeStruct((B, N, D), jnp.float32),
        grid_spec=grid_spec,
        compiler_params=pltpu.CompilerParams(dimension_semantics=("parallel",)),
    )(xp, params["patch_w"], params["patch_b"], params["pos_embed"])


# ----------------------------------------------------------------------------
# Kernel 3: fused DiTBlock (adaLN + RMSNorm + attention + RMSNorm + MLP)
#   grid over batch; weights resident in VMEM; per-head attention is an
#   unrolled loop of 2-D MXU matmuls (no 3-D reshapes/concats inside the kernel).
# ----------------------------------------------------------------------------
def _dit_block_kernel(x_ref, c_ref,
                      mod_w, mod_b, gains_ref,
                      qkv_w, qkv_b, proj_w, proj_b,
                      fc1_w, fc1_b, fc2_w, fc2_b,
                      out_ref, *, num_heads):
    N = x_ref.shape[1]
    D = x_ref.shape[2]
    Hd = D // num_heads

    x = x_ref[0]                                               # (N, D)
    c = c_ref[0]                                               # (1, D)

    g_n1 = gains_ref[0:1, 0:1]
    g_n2 = gains_ref[0:1, 1:2]
    g_q = gains_ref[0:1, 2:3]
    g_k = gains_ref[0:1, 3:4]

    # adaLN modulation: SiLU(c) @ W + b, chunked into 6
    mod = jnp.dot(_silu(c), mod_w[...], preferred_element_type=jnp.float32) + mod_b[...]
    shift_msa = mod[:, 0 * D:1 * D]
    scale_msa = mod[:, 1 * D:2 * D]
    gate_msa = jnp.tanh(mod[:, 2 * D:3 * D])
    shift_mlp = mod[:, 3 * D:4 * D]
    scale_mlp = mod[:, 4 * D:5 * D]
    gate_mlp = jnp.tanh(mod[:, 5 * D:6 * D])

    # ---- attention branch ----
    xn = _rmsnorm(x, g_n1, D ** 0.5)
    h = xn * (1.0 + scale_msa) + shift_msa
    qkv = jnp.dot(h, qkv_w[...], preferred_element_type=jnp.float32) + qkv_b[...]

    proj_w_v = proj_w[...]
    attn_out = jnp.zeros((N, D), jnp.float32)
    for hh in range(num_heads):
        s = hh * Hd
        q_h = qkv[:, 0 * D + s: 0 * D + s + Hd]
        k_h = qkv[:, 1 * D + s: 1 * D + s + Hd]
        v_h = qkv[:, 2 * D + s: 2 * D + s + Hd]
        q_h = _rmsnorm(q_h, g_q, Hd ** 0.5) * (Hd ** -0.5)
        k_h = _rmsnorm(k_h, g_k, Hd ** 0.5)
        att = lax.dot_general(q_h, k_h, (((1,), (1,)), ((), ())),
                              preferred_element_type=jnp.float32)   # (N, N)
        att = _softmax_last(att)
        o_h = jnp.dot(att, v_h, preferred_element_type=jnp.float32)  # (N, Hd)
        # concat over heads + output proj  ==  sum_h o_h @ proj_w[rows of head h]
        attn_out = attn_out + jnp.dot(o_h, proj_w_v[s:s + Hd, :],
                                      preferred_element_type=jnp.float32)
    attn_out = attn_out + proj_b[...]
    x = x + gate_msa * attn_out

    # ---- MLP branch ----
    xn2 = _rmsnorm(x, g_n2, D ** 0.5)
    h2 = xn2 * (1.0 + scale_mlp) + shift_mlp
    h2 = jnp.dot(h2, fc1_w[...], preferred_element_type=jnp.float32) + fc1_b[...]
    h2 = _gelu_tanh(h2)
    h2 = jnp.dot(h2, fc2_w[...], preferred_element_type=jnp.float32) + fc2_b[...]
    x = x + gate_mlp * h2

    out_ref[...] = x[None]


def dit_block_forward(x, c3, bp, num_heads):
    B, N, D = x.shape
    Dh = bp["fc1_w"].shape[1]
    full2 = lambda b: (0, 0)
    grid_spec = pltpu.PrefetchScalarGridSpec(
        num_scalar_prefetch=0,
        grid=(B,),
        in_specs=[
            pl.BlockSpec((1, N, D), lambda b: (b, 0, 0)),      # x
            pl.BlockSpec((1, 1, D), lambda b: (b, 0, 0)),      # c
            pl.BlockSpec((D, 6 * D), full2),                   # adaLN W
            pl.BlockSpec((1, 6 * D), full2),                   # adaLN b
            pl.BlockSpec((1, 4), full2),                       # [g_norm1,g_norm2,g_q,g_k]
            pl.BlockSpec((D, 3 * D), full2),                   # qkv W
            pl.BlockSpec((1, 3 * D), full2),                   # qkv b
            pl.BlockSpec((D, D), full2),                       # proj W
            pl.BlockSpec((1, D), full2),                       # proj b
            pl.BlockSpec((D, Dh), full2),                      # fc1 W
            pl.BlockSpec((1, Dh), full2),                      # fc1 b
            pl.BlockSpec((Dh, D), full2),                      # fc2 W
            pl.BlockSpec((1, D), full2),                       # fc2 b
        ],
        out_specs=pl.BlockSpec((1, N, D), lambda b: (b, 0, 0)),
    )
    kern = functools.partial(_dit_block_kernel, num_heads=num_heads)
    return pl.pallas_call(
        kern,
        out_shape=jax.ShapeDtypeStruct((B, N, D), jnp.float32),
        grid_spec=grid_spec,
        compiler_params=pltpu.CompilerParams(dimension_semantics=("parallel",)),
    )(x, c3, bp["mod_w"], bp["mod_b"], bp["gains"],
      bp["qkv_w"], bp["qkv_b"], bp["proj_w"], bp["proj_b"],
      bp["fc1_w"], bp["fc1_b"], bp["fc2_w"], bp["fc2_b"])


# ----------------------------------------------------------------------------
# Kernel 4: FinalLayer (adaLN + RMSNorm + modulate + linear)
# ----------------------------------------------------------------------------
def _final_layer_kernel(x_ref, c_ref, mod_w, mod_b, g_ref, lin_w, lin_b, out_ref):
    D = x_ref.shape[2]
    x = x_ref[0]
    c = c_ref[0]
    g = g_ref[0:1, 0:1]
    mod = jnp.dot(_silu(c), mod_w[...], preferred_element_type=jnp.float32) + mod_b[...]
    shift = mod[:, 0:D]
    scale = mod[:, D:2 * D]
    xn = _rmsnorm(x, g, D ** 0.5)
    h = xn * (1.0 + scale) + shift
    out_ref[...] = (jnp.dot(h, lin_w[...], preferred_element_type=jnp.float32)
                    + lin_b[...])[None]


def final_layer_forward(x, c3, params):
    B, N, D = x.shape
    Pout = params["fin_lin_w"].shape[1]
    full2 = lambda b: (0, 0)
    grid_spec = pltpu.PrefetchScalarGridSpec(
        num_scalar_prefetch=0,
        grid=(B,),
        in_specs=[
            pl.BlockSpec((1, N, D), lambda b: (b, 0, 0)),
            pl.BlockSpec((1, 1, D), lambda b: (b, 0, 0)),
            pl.BlockSpec((D, 2 * D), full2),
            pl.BlockSpec((1, 2 * D), full2),
            pl.BlockSpec((1, 1), full2),
            pl.BlockSpec((D, Pout), full2),
            pl.BlockSpec((1, Pout), full2),
        ],
        out_specs=pl.BlockSpec((1, N, Pout), lambda b: (b, 0, 0)),
    )
    return pl.pallas_call(
        _final_layer_kernel,
        out_shape=jax.ShapeDtypeStruct((B, N, Pout), jnp.float32),
        grid_spec=grid_spec,
        compiler_params=pltpu.CompilerParams(dimension_semantics=("parallel",)),
    )(x, c3, params["fin_mod_w"], params["fin_mod_b"], params["fin_norm_g"],
      params["fin_lin_w"], params["fin_lin_b"])


# ----------------------------------------------------------------------------
# Full MFDiT forward (Pallas path)
# ----------------------------------------------------------------------------
def unpatchify(x, p, c):
    B, N, _ = x.shape
    h = w = int(round(math.sqrt(N)))
    x = x.reshape(B, h, w, p, p, c)
    x = jnp.transpose(x, (0, 5, 1, 3, 2, 4))                  # 'nhwpqc->nchpwq'
    return x.reshape(B, c, h * p, w * p)


def mfdit_forward(params, x, t, r, y):
    num_heads = params["num_heads"]
    c = conditioning_forward(t, r, y, params)                  # (B, D)
    B, D = c.shape
    c3 = c.reshape(B, 1, D)
    xt = patch_embed_forward(x, params)                        # (B, N, D)
    for bp in params["blocks"]:
        xt = dit_block_forward(xt, c3, bp, num_heads)
    tokens = final_layer_forward(xt, c3, params)               # (B, N, p*p*C)
    return unpatchify(tokens, params["patch_size"], params["out_channels"])


# ----------------------------------------------------------------------------
# Parameter init (weights stored already transposed to (in, out) layout).
# NOTE: adaLN / final-linear weights are random (not zero) so the kernels are
# actually exercised by the numeric check; forward-pass semantics are unchanged.
# ----------------------------------------------------------------------------
def init_params(key, *, input_size, patch_size, in_channels, dim, depth,
                num_heads, mlp_ratio, num_classes, nfreq=256):
    D, p, C = dim, patch_size, in_channels
    Dh = int(dim * mlp_ratio)
    keys = iter(jax.random.split(key, 64))

    def w(shape, std=0.02):
        return jax.random.normal(next(keys), shape, jnp.float32) * std

    params = {
        "patch_size": p,
        "out_channels": C,
        "num_heads": num_heads,
        "nfreq": nfreq,
        "patch_w": w((C * p * p, D)),
        "patch_b": jnp.zeros((1, D), jnp.float32),
        "pos_embed": jnp.asarray(get_2d_sincos_pos_embed(D, input_size // p),
                                 dtype=jnp.float32),
        "t_w1": w((nfreq, D)), "t_b1": jnp.zeros((1, D), jnp.float32),
        "t_w2": w((D, D)), "t_b2": jnp.zeros((1, D), jnp.float32),
        "r_w1": w((nfreq, D)), "r_b1": jnp.zeros((1, D), jnp.float32),
        "r_w2": w((D, D)), "r_b2": jnp.zeros((1, D), jnp.float32),
        "emb_table": w((num_classes + 1, D)),
        "fin_mod_w": w((D, 2 * D)), "fin_mod_b": jnp.zeros((1, 2 * D), jnp.float32),
        "fin_norm_g": jnp.ones((1, 1), jnp.float32),
        "fin_lin_w": w((D, p * p * C)),
        "fin_lin_b": jnp.zeros((1, p * p * C), jnp.float32),
    }
    blocks = []
    for _ in range(depth):
        blocks.append({
            "mod_w": w((D, 6 * D)), "mod_b": jnp.zeros((1, 6 * D), jnp.float32),
            "gains": jnp.ones((1, 4), jnp.float32),   # [norm1.g, norm2.g, q_norm.g, k_norm.g]
            "qkv_w": w((D, 3 * D)), "qkv_b": jnp.zeros((1, 3 * D), jnp.float32),
            "proj_w": w((D, D)), "proj_b": jnp.zeros((1, D), jnp.float32),
            "fc1_w": w((D, Dh)), "fc1_b": jnp.zeros((1, Dh), jnp.float32),
            "fc2_w": w((Dh, D)), "fc2_b": jnp.zeros((1, D), jnp.float32),
        })
    params["blocks"] = blocks
    return params


# ----------------------------------------------------------------------------
# Pure-JAX reference (same math, highest matmul precision) for correctness check
# ----------------------------------------------------------------------------
def reference_forward(params, x, t, r, y):
    hp = lax.Precision.HIGHEST
    dot = lambda a, b: jnp.dot(a, b, precision=hp)

    p = params["patch_size"]
    C = params["out_channels"]
    H_heads = params["num_heads"]
    nfreq = params["t_w1"].shape[0]
    half = nfreq // 2
    B, _, H, W = x.shape
    h_, w_ = H // p, W // p
    D = params["patch_w"].shape[1]

    # conditioning
    freqs = jnp.exp(-math.log(10000.0) * jnp.arange(half, dtype=jnp.float32) / half)

    def temb(tv, w1, b1, w2, b2):
        args = (tv.astype(jnp.float32) * 1000.0)[:, None] * freqs[None, :]
        raw = jnp.concatenate([jnp.cos(args), jnp.sin(args)], axis=-1)
        hid = _silu(dot(raw, w1) + b1)
        return dot(hid, w2) + b2

    t_emb = temb(t, params["t_w1"], params["t_b1"], params["t_w2"], params["t_b2"])
    r_emb = temb(r, params["r_w1"], params["r_b1"], params["r_w2"], params["r_b2"])
    y_emb = jnp.take(params["emb_table"], y, axis=0)
    c = t_emb + r_emb + y_emb                                   # (B, D)

    # patch embed
    xp = x.reshape(B, C, h_, p, w_, p)
    xp = jnp.transpose(xp, (0, 2, 4, 1, 3, 5)).reshape(B, h_ * w_, C * p * p)
    xt = dot(xp, params["patch_w"]) + params["patch_b"] + params["pos_embed"]

    def block(xx, bp):
        N = xx.shape[1]
        Hd = D // H_heads
        mod = dot(_silu(c), bp["mod_w"]) + bp["mod_b"]
        sh_msa, sc_msa, g_msa, sh_mlp, sc_mlp, g_mlp = jnp.split(mod, 6, axis=-1)
        g_msa, g_mlp = jnp.tanh(g_msa), jnp.tanh(g_mlp)
        g1, g2, gq, gk = (bp["gains"][0, i] for i in range(4))

        xn = _rmsnorm(xx, g1, D ** 0.5)
        hh = xn * (1 + sc_msa[:, None, :]) + sh_msa[:, None, :]
        qkv = dot(hh, bp["qkv_w"]) + bp["qkv_b"]
        q, k, v = qkv[..., :D], qkv[..., D:2 * D], qkv[..., 2 * D:]
        q = q.reshape(B, N, H_heads, Hd).transpose(0, 2, 1, 3)
        k = k.reshape(B, N, H_heads, Hd).transpose(0, 2, 1, 3)
        v = v.reshape(B, N, H_heads, Hd).transpose(0, 2, 1, 3)
        q = _rmsnorm(q, gq, Hd ** 0.5) * (Hd ** -0.5)
        k = _rmsnorm(k, gk, Hd ** 0.5)
        att = _softmax_last(jnp.einsum("bhqd,bhkd->bhqk", q, k, precision=hp))
        o = jnp.einsum("bhqk,bhkd->bhqd", att, v, precision=hp)
        o = o.transpose(0, 2, 1, 3).reshape(B, N, D)
        o = dot(o, bp["proj_w"]) + bp["proj_b"]
        xx = xx + g_msa[:, None, :] * o

        xn2 = _rmsnorm(xx, g2, D ** 0.5)
        h2 = xn2 * (1 + sc_mlp[:, None, :]) + sh_mlp[:, None, :]
        h2 = _gelu_tanh(dot(h2, bp["fc1_w"]) + bp["fc1_b"])
        h2 = dot(h2, bp["fc2_w"]) + bp["fc2_b"]
        return xx + g_mlp[:, None, :] * h2

    for bp in params["blocks"]:
        xt = block(xt, bp)

    mod = dot(_silu(c), params["fin_mod_w"]) + params["fin_mod_b"]
    shift, scale = jnp.split(mod, 2, axis=-1)
    xn = _rmsnorm(xt, params["fin_norm_g"][0, 0], D ** 0.5)
    hh = xn * (1 + scale[:, None, :]) + shift[:, None, :]
    tokens = dot(hh, params["fin_lin_w"]) + params["fin_lin_b"]
    return unpatchify(tokens, p, C)


# ----------------------------------------------------------------------------
if __name__ == "__main__":
    key = jax.random.PRNGKey(0)
    k_param, k_x, k_t, k_r, k_y = jax.random.split(key, 5)

    input_size, patch_size, in_channels = 16, 2, 4
    dim, depth, num_heads, mlp_ratio = 32, 2, 4, 4.0
    num_classes, batch = 10, 2

    params = init_params(k_param, input_size=input_size, patch_size=patch_size,
                         in_channels=in_channels, dim=dim, depth=depth,
                         num_heads=num_heads, mlp_ratio=mlp_ratio,
                         num_classes=num_classes)

    x = jax.random.normal(k_x, (batch, in_channels, input_size, input_size), jnp.float32)
    t = jax.random.uniform(k_t, (batch,), jnp.float32)
    r = jax.random.uniform(k_r, (batch,), jnp.float32)
    y = jax.random.randint(k_y, (batch,), 0, num_classes + 1, dtype=jnp.int32)

    out = jax.block_until_ready(mfdit_forward(params, x, t, r, y))
    ref = jax.block_until_ready(reference_forward(params, x, t, r, y))

    assert out.shape == (batch, in_channels, input_size, input_size)
    err = float(jnp.max(jnp.abs(out - ref)))
    scale = float(jnp.max(jnp.abs(ref))) + 1e-6
    assert err / scale < 1e-2, f"Pallas vs JAX reference mismatch: {err} vs scale {scale}"

    print("KERNEL_OK")
</pallas_src>

<mosaic_0001>
module attributes {stable_mosaic.version = 11 : i64} {
  func.func @_cond_kernel(%arg0: i32, %arg1: memref<2x1xf32, #tpu.memory_space<vmem>>, %arg2: memref<2x1xf32, #tpu.memory_space<vmem>>, %arg3: memref<2x1xi32, #tpu.memory_space<vmem>>, %arg4: memref<1x128xf32, #tpu.memory_space<vmem>>, %arg5: memref<256x32xf32, #tpu.memory_space<vmem>>, %arg6: memref<1x32xf32, #tpu.memory_space<vmem>>, %arg7: memref<32x32xf32, #tpu.memory_space<vmem>>, %arg8: memref<1x32xf32, #tpu.memory_space<vmem>>, %arg9: memref<256x32xf32, #tpu.memory_space<vmem>>, %arg10: memref<1x32xf32, #tpu.memory_space<vmem>>, %arg11: memref<32x32xf32, #tpu.memory_space<vmem>>, %arg12: memref<1x32xf32, #tpu.memory_space<vmem>>, %arg13: memref<11x32xf32, #tpu.memory_space<vmem>>, %arg14: memref<2x32xf32, #tpu.memory_space<vmem>>) attributes {dimension_semantics = [#tpu.dimension_semantics<parallel>], iteration_bounds = array<i64: 1>, scalar_prefetch = 0 : i64, scratch_operands = 0 : i64, tpu.core_type = #tpu.core_type<tc>, window_params = [{transform_indices = @transform_0, window_bounds = array<i64: 2, 1>}, {transform_indices = @transform_1, window_bounds = array<i64: 2, 1>}, {transform_indices = @transform_2, window_bounds = array<i64: 2, 1>}, {pipeline_mode = #tpu.pipeline_mode<synchronous>, transform_indices = @transform_3, window_bounds = array<i64: 1, 128>}, {pipeline_mode = #tpu.pipeline_mode<synchronous>, transform_indices = @transform_4, window_bounds = array<i64: 256, 32>}, {pipeline_mode = #tpu.pipeline_mode<synchronous>, transform_indices = @transform_5, window_bounds = array<i64: 1, 32>}, {pipeline_mode = #tpu.pipeline_mode<synchronous>, transform_indices = @transform_6, window_bounds = array<i64: 32, 32>}, {pipeline_mode = #tpu.pipeline_mode<synchronous>, transform_indices = @transform_7, window_bounds = array<i64: 1, 32>}, {pipeline_mode = #tpu.pipeline_mode<synchronous>, transform_indices = @transform_8, window_bounds = array<i64: 256, 32>}, {pipeline_mode = #tpu.pipeline_mode<synchronous>, transform_indices = @transform_9, window_bounds = array<i64: 1, 32>}, {pipeline_mode = #tpu.pipeline_mode<synchronous>, transform_indices = @transform_10, window_bounds = array<i64: 32, 32>}, {pipeline_mode = #tpu.pipeline_mode<synchronous>, transform_indices = @transform_11, window_bounds = array<i64: 1, 32>}, {pipeline_mode = #tpu.pipeline_mode<synchronous>, transform_indices = @transform_12, window_bounds = array<i64: 11, 32>}, {transform_indices = @transform_13, window_bounds = array<i64: 2, 32>}]} {
    %c0 = arith.constant 0 : index
    %c0_0 = arith.constant 0 : index
    %0 = vector.load %arg4[%c0, %c0_0] : memref<1x128xf32, #tpu.memory_space<vmem>>, vector<1x128xf32>
    %c0_1 = arith.constant 0 : index
    %c0_2 = arith.constant 0 : index
    %1 = vector.load %arg1[%c0_1, %c0_2] : memref<2x1xf32, #tpu.memory_space<vmem>>, vector<2x1xf32>
    %cst = arith.constant 1.000000e+03 : f32
    %2 = vector.broadcast %cst : f32 to vector<2x1xf32>
    %3 = arith.mulf %1, %2 : vector<2x1xf32>
    %4 = vector.broadcast %3 : vector<2x1xf32> to vector<2x128xf32>
    %5 = vector.broadcast %0 : vector<1x128xf32> to vector<2x128xf32>
    %6 = arith.mulf %4, %5 : vector<2x128xf32>
    %7 = math.cos %6 : vector<2x128xf32>
    %8 = math.sin %6 : vector<2x128xf32>
    %c0_3 = arith.constant 0 : index
    %c0_4 = arith.constant 0 : index
    %9 = vector.load %arg5[%c0_3, %c0_4] : memref<256x32xf32, #tpu.memory_space<vmem>>, vector<128x32xf32>
    %cst_5 = arith.constant dense<0.000000e+00> : vector<2x32xf32>
    %10 = tpu.matmul %7, %9, %cst_5 {dimension_numbers = #tpu.dot_dimension_numbers<[1], [0], [0], [1], [0, 0, 1, 1], [], []>} : vector<2x128xf32>, vector<128x32xf32>, vector<2x32xf32> -> vector<2x32xf32>
    %c128 = arith.constant 128 : index
    %c0_6 = arith.constant 0 : index
    %11 = vector.load %arg5[%c128, %c0_6] : memref<256x32xf32, #tpu.memory_space<vmem>>, vector<128x32xf32>
    %cst_7 = arith.constant dense<0.000000e+00> : vector<2x32xf32>
    %12 = tpu.matmul %8, %11, %cst_7 {dimension_numbers = #tpu.dot_dimension_numbers<[1], [0], [0], [1], [0, 0, 1, 1], [], []>} : vector<2x128xf32>, vector<128x32xf32>, vector<2x32xf32> -> vector<2x32xf32>
    %13 = arith.addf %10, %12 : vector<2x32xf32>
    %c0_8 = arith.constant 0 : index
    %c0_9 = arith.constant 0 : index
    %14 = vector.load %arg6[%c0_8, %c0_9] : memref<1x32xf32, #tpu.memory_space<vmem>>, vector<1x32xf32>
    %15 = vector.broadcast %14 : vector<1x32xf32> to vector<2x32xf32>
    %16 = arith.addf %13, %15 : vector<2x32xf32>
    %17 = arith.negf %16 : vector<2x32xf32>
    %18 = math.exp %17 : vector<2x32xf32>
    %cst_10 = arith.constant 1.000000e+00 : f32
    %19 = vector.broadcast %cst_10 : f32 to vector<2x32xf32>
    %20 = arith.addf %19, %18 : vector<2x32xf32>
    %21 = arith.divf %19, %20 : vector<2x32xf32>
    %22 = arith.mulf %16, %21 : vector<2x32xf32>
    %c0_11 = arith.constant 0 : index
    %c0_12 = arith.constant 0 : index
    %23 = vector.load %arg7[%c0_11, %c0_12] : memref<32x32xf32, #tpu.memory_space<vmem>>, vector<32x32xf32>
    %cst_13 = arith.constant dense<0.000000e+00> : vector<2x32xf32>
    %24 = tpu.matmul %22, %23, %cst_13 {dimension_numbers = #tpu.dot_dimension_numbers<[1], [0], [0], [1], [0, 0, 1, 1], [], []>} : vector<2x32xf32>, vector<32x32xf32>, vector<2x32xf32> -> vector<2x32xf32>
    %c0_14 = arith.constant 0 : index
    %c0_15 = arith.constant 0 : index
    %25 = vector.load %arg8[%c0_14, %c0_15] : memref<1x32xf32, #tpu.memory_space<vmem>>, vector<1x32xf32>
    %26 = vector.broadcast %25 : vector<1x32xf32> to vector<2x32xf32>
    %27 = arith.addf %24, %26 : vector<2x32xf32>
    %c0_16 = arith.constant 0 : index
    %c0_17 = arith.constant 0 : index
    %28 = vector.load %arg2[%c0_16, %c0_17] : memref<2x1xf32, #tpu.memory_space<vmem>>, vector<2x1xf32>
    %cst_18 = arith.constant 1.000000e+03 : f32
    %29 = vector.broadcast %cst_18 : f32 to vector<2x1xf32>
    %30 = arith.mulf %28, %29 : vector<2x1xf32>
    %31 = vector.broadcast %30 : vector<2x1xf32> to vector<2x128xf32>
    %32 = vector.broadcast %0 : vector<1x128xf32> to vector<2x128xf32>
    %33 = arith.mulf %31, %32 : vector<2x128xf32>
    %34 = math.cos %33 : vector<2x128xf32>
    %35 = math.sin %33 : vector<2x128xf32>
    %c0_19 = arith.constant 0 : index
    %c0_20 = arith.constant 0 : index
    %36 = vector.load %arg9[%c0_19, %c0_20] : memref<256x32xf32, #tpu.memory_space<vmem>>, vector<128x32xf32>
    %cst_21 = arith.constant dense<0.000000e+00> : vector<2x32xf32>
    %37 = tpu.matmul %34, %36, %cst_21 {dimension_numbers = #tpu.dot_dimension_numbers<[1], [0], [0], [1], [0, 0, 1, 1], [], []>} : vector<2x128xf32>, vector<128x32xf32>, vector<2x32xf32> -> vector<2x32xf32>
    %c128_22 = arith.constant 128 : index
    %c0_23 = arith.constant 0 : index
    %38 = vector.load %arg9[%c128_22, %c0_23] : memref<256x32xf32, #tpu.memory_space<vmem>>, vector<128x32xf32>
    %cst_24 = arith.constant dense<0.000000e+00> : vector<2x32xf32>
    %39 = tpu.matmul %35, %38, %cst_24 {dimension_numbers = #tpu.dot_dimension_numbers<[1], [0], [0], [1], [0, 0, 1, 1], [], []>} : vector<2x128xf32>, vector<128x32xf32>, vector<2x32xf32> -> vector<2x32xf32>
    %40 = arith.addf %37, %39 : vector<2x32xf32>
    %c0_25 = arith.constant 0 : index
    %c0_26 = arith.constant 0 : index
    %41 = vector.load %arg10[%c0_25, %c0_26] : memref<1x32xf32, #tpu.memory_space<vmem>>, vector<1x32xf32>
    %42 = vector.broadcast %41 : vector<1x32xf32> to vector<2x32xf32>
    %43 = arith.addf %40, %42 : vector<2x32xf32>
    %44 = arith.negf %43 : vector<2x32xf32>
    %45 = math.exp %44 : vector<2x32xf32>
    %cst_27 = arith.constant 1.000000e+00 : f32
    %46 = vector.broadcast %cst_27 : f32 to vector<2x32xf32>
    %47 = arith.addf %46, %45 : vector<2x32xf32>
    %48 = arith.divf %46, %47 : vector<2x32xf32>
    %49 = arith.mulf %43, %48 : vector<2x32xf32>
    %c0_28 = arith.constant 0 : index
    %c0_29 = arith.constant 0 : index
    %50 = vector.load %arg11[%c0_28, %c0_29] : memref<32x32xf32, #tpu.memory_space<vmem>>, vector<32x32xf32>
    %cst_30 = arith.constant dense<0.000000e+00> : vector<2x32xf32>
    %51 = tpu.matmul %49, %50, %cst_30 {dimension_numbers = #tpu.dot_dimension_numbers<[1], [0], [0], [1], [0, 0, 1, 1], [], []>} : vector<2x32xf32>, vector<32x32xf32>, vector<2x32xf32> -> vector<2x32xf32>
    %c0_31 = arith.constant 0 : index
    %c0_32 = arith.constant 0 : index
    %52 = vector.load %arg12[%c0_31, %c0_32] : memref<1x32xf32, #tpu.memory_space<vmem>>, vector<1x32xf32>
    %53 = vector.broadcast %52 : vector<1x32xf32> to vector<2x32xf32>
    %54 = arith.addf %51, %53 : vector<2x32xf32>
    %55 = tpu.iota {dimensions = array<i32: 1>} : vector<2x11xi32>
    %c0_33 = arith.constant 0 : index
    %c0_34 = arith.constant 0 : index
    %56 = vector.load %arg3[%c0_33, %c0_34] : memref<2x1xi32, #tpu.memory_space<vmem>>, vector<2x1xi32>
    %57 = vector.broadcast %56 : vector<2x1xi32> to vector<2x11xi32>
    %58 = arith.cmpi eq, %57, %55 : vector<2x11xi32>
    %59 = arith.extui %58 : vector<2x11xi1> to vector<2x11xi32>
    %60 = arith.sitofp %59 : vector<2x11xi32> to vector<2x11xf32>
    %c0_35 = arith.constant 0 : index
    %c0_36 = arith.constant 0 : index
    %61 = vector.load %arg13[%c0_35, %c0_36] : memref<11x32xf32, #tpu.memory_space<vmem>>, vector<11x32xf32>
    %cst_37 = arith.constant dense<0.000000e+00> : vector<2x32xf32>
    %62 = tpu.matmul %60, %61, %cst_37 {dimension_numbers = #tpu.dot_dimension_numbers<[1], [0], [0], [1], [0, 0, 1, 1], [], []>} : vector<2x11xf32>, vector<11x32xf32>, vector<2x32xf32> -> vector<2x32xf32>
    %63 = arith.addf %27, %54 : vector<2x32xf32>
    %64 = arith.addf %63, %62 : vector<2x32xf32>
    %c0_38 = arith.constant 0 : index
    %c0_39 = arith.constant 0 : index
    %65 = vector.load %arg14[%c0_38, %c0_39] : memref<2x32xf32, #tpu.memory_space<vmem>>, vector<2x32xf32>
    tpu.vector_store %arg14[%c0_38, %c0_39], %64 {strides = array<i32>} : memref<2x32xf32, #tpu.memory_space<vmem>>, vector<2x32xf32>,
    return
  }
  func.func @transform_0(%arg0: i32) -> (i32, i32) {
    %c0_i32 = arith.constant 0 : i32
    %c0_i32_0 = arith.constant 0 : i32
    return %arg0, %c0_i32 : i32, i32
  }
  func.func @transform_1(%arg0: i32) -> (i32, i32) {
    %c0_i32 = arith.constant 0 : i32
    %c0_i32_0 = arith.constant 0 : i32
    return %arg0, %c0_i32 : i32, i32
  }
  func.func @transform_2(%arg0: i32) -> (i32, i32) {
    %c0_i32 = arith.constant 0 : i32
    %c0_i32_0 = arith.constant 0 : i32
    return %arg0, %c0_i32 : i32, i32
  }
  func.func @transform_3(%arg0: i32) -> (i32, i32) {
    %c0_i32 = arith.constant 0 : i32
    %c0_i32_0 = arith.constant 0 : i32
    %c0_i32_1 = arith.constant 0 : i32
    return %c0_i32, %c0_i32_0 : i32, i32
  }
  func.func @transform_4(%arg0: i32) -> (i32, i32) {
    %c0_i32 = arith.constant 0 : i32
    %c0_i32_0 = arith.constant 0 : i32
    %c0_i32_1 = arith.constant 0 : i32
    return %c0_i32, %c0_i32_0 : i32, i32
  }
  func.func @transform_5(%arg0: i32) -> (i32, i32) {
    %c0_i32 = arith.constant 0 : i32
    %c0_i32_0 = arith.constant 0 : i32
    %c0_i32_1 = arith.constant 0 : i32
    return %c0_i32, %c0_i32_0 : i32, i32
  }
  func.func @transform_6(%arg0: i32) -> (i32, i32) {
    %c0_i32 = arith.constant 0 : i32
    %c0_i32_0 = arith.constant 0 : i32
    %c0_i32_1 = arith.constant 0 : i32
    return %c0_i32, %c0_i32_0 : i32, i32
  }
  func.func @transform_7(%arg0: i32) -> (i32, i32) {
    %c0_i32 = arith.constant 0 : i32
    %c0_i32_0 = arith.constant 0 : i32
    %c0_i32_1 = arith.constant 0 : i32
    return %c0_i32, %c0_i32_0 : i32, i32
  }
  func.func @transform_8(%arg0: i32) -> (i32, i32) {
    %c0_i32 = arith.constant 0 : i32
    %c0_i32_0 = arith.constant 0 : i32
    %c0_i32_1 = arith.constant 0 : i32
    return %c0_i32, %c0_i32_0 : i32, i32
  }
  func.func @transform_9(%arg0: i32) -> (i32, i32) {
    %c0_i32 = arith.constant 0 : i32
    %c0_i32_0 = arith.constant 0 : i32
    %c0_i32_1 = arith.constant 0 : i32
    return %c0_i32, %c0_i32_0 : i32, i32
  }
  func.func @transform_10(%arg0: i32) -> (i32, i32) {
    %c0_i32 = arith.constant 0 : i32
    %c0_i32_0 = arith.constant 0 : i32
    %c0_i32_1 = arith.constant 0 : i32
    return %c0_i32, %c0_i32_0 : i32, i32
  }
  func.func @transform_11(%arg0: i32) -> (i32, i32) {
    %c0_i32 = arith.constant 0 : i32
    %c0_i32_0 = arith.constant 0 : i32
    %c0_i32_1 = arith.constant 0 : i32
    return %c0_i32, %c0_i32_0 : i32, i32
  }
  func.func @transform_12(%arg0: i32) -> (i32, i32) {
    %c0_i32 = arith.constant 0 : i32
    %c0_i32_0 = arith.constant 0 : i32
    %c0_i32_1 = arith.constant 0 : i32
    return %c0_i32, %c0_i32_0 : i32, i32
  }
  func.func @transform_13(%arg0: i32) -> (i32, i32) {
    %c0_i32 = arith.constant 0 : i32
    %c0_i32_0 = arith.constant 0 : i32
    return %arg0, %c0_i32 : i32, i32
  }
}

</mosaic_0001>

<llo_original>
// kernel: tpu_custom_call.1
$region0: #{tpu_custom_call.1}
  #allocation0 [shape = 'u32[]', space=smem, size = 0x4, offset = 0x4, fixed_abs, tag = 'smem constant byte address 0x4 - core index']
  #allocation1 [shape = 'u32[144,128]{1,0:T(1,128)}', space=vmem, size = 0x12000, scoped, tag = 'internal scratch']
  %s0 = inlined_call_operand.vmem [shape: f32[2,1], index: 0, kind: input, shape index: {}]
  %s1 = inlined_call_operand.vmem [shape: f32[2,1], index: 1, kind: input, shape index: {}]
  %s2 = inlined_call_operand.vmem [shape: s32[2,1], index: 2, kind: input, shape index: {}]
  %s3 = inlined_call_operand.vmem [shape: f32[1,128], index: 3, kind: input, shape index: {}]
  %s4 = inlined_call_operand.vmem [shape: f32[256,32], index: 4, kind: input, shape index: {}]
  %s5 = inlined_call_operand.vmem [shape: f32[1,32], index: 5, kind: input, shape index: {}]
  %s6 = inlined_call_operand.vmem [shape: f32[32,32], index: 6, kind: input, shape index: {}]
  %s7 = inlined_call_operand.vmem [shape: f32[1,32], index: 7, kind: input, shape index: {}]
  %s8 = inlined_call_operand.vmem [shape: f32[256,32], index: 8, kind: input, shape index: {}]
  %s9 = inlined_call_operand.vmem [shape: f32[1,32], index: 9, kind: input, shape index: {}]
  %s10 = inlined_call_operand.vmem [shape: f32[32,32], index: 10, kind: input, shape index: {}]
  %s11 = inlined_call_operand.vmem [shape: f32[1,32], index: 11, kind: input, shape index: {}]
  %s12 = inlined_call_operand.vmem [shape: f32[11,32], index: 12, kind: input, shape index: {}]
  %s13 = inlined_call_operand.hbm [shape: f32[2,32], index: 13, kind: output, shape index: {}]
  %s14 = sld [smem:[#allocation0]]
  $region62: #{tpu_custom_call.1} parent=0
    _
  %s16 = ssub.s32 1, %s14
  %s17 = scalar_select 0, %s16, %s14
  $region1: #{tpu_custom_call.1} parent=0
    #allocation2 [shape = 'u8[1024]{0}', space=vmem, size = 0x400, scoped, tag = 'output window, operand 0, single buffered']
    #allocation3 [shape = 's32[1]{0}', space=sflag, size = 0x4, scoped, tag = 'scoped memory for tpu_custom_call.1']
    %18 = vsyncpa [#allocation3], 0
    // Predicated region
    $region2: #{tpu_custom_call.1} parent=1 // pred_check
      _
    $region3: #{tpu_custom_call.1} parent=1 // pred_check_branch
      %20 = sbr.rel (0) target = $region5
    $region4: #{tpu_custom_call.1} parent=1 // pred_region
      _
    $region5: #{tpu_custom_call.1} parent=1 // pred_fallthru
      _
    // Predicated region
    $region6: #{tpu_custom_call.1} parent=1 // pred_check
      _
    $region7: #{tpu_custom_call.1} parent=1 // pred_check_branch
      %22 = sbr.rel (0) target = $region9
    $region8: #{tpu_custom_call.1} parent=1 // pred_region
      _
    $region9: #{tpu_custom_call.1} parent=1 // pred_fallthru
      _
    // Predicated region
    $region10: #{tpu_custom_call.1} parent=1 // pred_check
      _
    $region11: #{tpu_custom_call.1} parent=1 // pred_check_branch
      %24 = sbr.rel (0) target = $region13
    $region12: #{tpu_custom_call.1} parent=1 // pred_region
      _
    $region13: #{tpu_custom_call.1} parent=1 // pred_fallthru
      _
    // Predicated region
    $region14: #{tpu_custom_call.1} parent=1 // pred_check
      _
    $region15: #{tpu_custom_call.1} parent=1 // pred_check_branch
      %26 = sbr.rel (0) target = $region17
    $region16: #{tpu_custom_call.1} parent=1 // pred_region
      _
    $region17: #{tpu_custom_call.1} parent=1 // pred_fallthru
      _
    // Predicated region
    $region18: #{tpu_custom_call.1} parent=1 // pred_check
      _
    $region19: #{tpu_custom_call.1} parent=1 // pred_check_branch
      %28 = sbr.rel (0) target = $region21
    $region20: #{tpu_custom_call.1} parent=1 // pred_region
      _
    $region21: #{tpu_custom_call.1} parent=1 // pred_fallthru
      _
    // Predicated region
    $region22: #{tpu_custom_call.1} parent=1 // pred_check
      _
    $region23: #{tpu_custom_call.1} parent=1 // pred_check_branch
      %30 = sbr.rel (0) target = $region25
    $region24: #{tpu_custom_call.1} parent=1 // pred_region
      _
    $region25: #{tpu_custom_call.1} parent=1 // pred_fallthru
      _
    // Predicated region
    $region26: #{tpu_custom_call.1} parent=1 // pred_check
      _
    $region27: #{tpu_custom_call.1} parent=1 // pred_check_branch
      %32 = sbr.rel (0) target = $region29
    $region28: #{tpu_custom_call.1} parent=1 // pred_region
      _
    $region29: #{tpu_custom_call.1} parent=1 // pred_fallthru
      _
    // Predicated region
    $region30: #{tpu_custom_call.1} parent=1 // pred_check
      _
    $region31: #{tpu_custom_call.1} parent=1 // pred_check_branch
      %34 = sbr.rel (0) target = $region33
    $region32: #{tpu_custom_call.1} parent=1 // pred_region
      _
    $region33: #{tpu_custom_call.1} parent=1 // pred_fallthru
      _
    // Predicated region
    $region34: #{tpu_custom_call.1} parent=1 // pred_check
      _
    $region35: #{tpu_custom_call.1} parent=1 // pred_check_branch
      %36 = sbr.rel (0) target = $region37
    $region36: #{tpu_custom_call.1} parent=1 // pred_region
      _
    $region37: #{tpu_custom_call.1} parent=1 // pred_fallthru
      _
    // Predicated region
    $region38: #{tpu_custom_call.1} parent=1 // pred_check
      _
    $region39: #{tpu_custom_call.1} parent=1 // pred_check_branch
      %38 = sbr.rel (0) target = $region41
    $region40: #{tpu_custom_call.1} parent=1 // pred_region
      _
    $region41: #{tpu_custom_call.1} parent=1 // pred_fallthru
      _
    // Predicated region
    $region42: #{tpu_custom_call.1} parent=1 // pred_check
      _
    $region43: #{tpu_custom_call.1} parent=1 // pred_check_branch
      %40 = sbr.rel (0) target = $region45
    $region44: #{tpu_custom_call.1} parent=1 // pred_region
      _
    $region45: #{tpu_custom_call.1} parent=1 // pred_fallthru
      _
    // Predicated region
    $region46: #{tpu_custom_call.1} parent=1 // pred_check
      _
    $region47: #{tpu_custom_call.1} parent=1 // pred_check_branch
      %42 = sbr.rel (0) target = $region49
    $region48: #{tpu_custom_call.1} parent=1 // pred_region
      _
    $region49: #{tpu_custom_call.1} parent=1 // pred_fallthru
      _
    // Predicated region
    $region50: #{tpu_custom_call.1} parent=1 // pred_check
      _
    $region51: #{tpu_custom_call.1} parent=1 // pred_check_branch
      %44 = sbr.rel (0) target = $region53
    $region52: #{tpu_custom_call.1} parent=1 // pred_region
      _
    $region53: #{tpu_custom_call.1} parent=1 // pred_fallthru
      _
    %v45 = vld [vmem:[%s3] sm:$0x1]
    %v46 = vld [vmem:[%s0] sm:$0x3]
    %v47 = vmul.f32 %v46, 1000.0
    %49 = vset.pattern.permute.xlu0 0
    %50 = vperm.xlu0 %49, %v47
    %v51 = vpop.permute.xlu0 %50
    %v54 = vlaneseq
    %v55 = vshrl.u32 %v54, 7
    %v56 = vsub.s32 0, %v55
    %v57 = vrot.slane %v45, %v56
    %v59 = vmul.f32 %v51, %v57
    %v60 = vand.u32 2147483647, %v59
    %vm61 = vcmp.le.f32.partialorder %v60, 0.7853982
    %vm62 = vcmp.lt.s32.totalorder %v59, 0
    %v63 = vand.u32 %v59, 2139095040
    %v64 = vshrl.u32 %v63, 23
    %v65 = vsub.s32 %v64, 127
    %v66 = vand.u32 2147483647, %v59
    %v67 = vand.u32 %v66, 8388607
    %v68 = vor.u32 %v67, 8388608
    %v69 = vsub.s32 0, %v68
    %v70 = vadd.s32 %v65, 1
    %vm71 = vcmp.gt.s32.totalorder %v70, 0
    %v72 = vsel %vm71, %v70, 0
    %v73 = vshrl.u32 %v72, 5
    %v74 = vand.u32 %v72, 31
    %v75 = vsub.s32 32, %v74
    %v76 = vshrl.u32 683565275, %v75
    %v77 = vshll.u32 683565275, %v74
    %v78 = vshrl.u32 2475754826, %v75
    %v79 = vor.u32 %v77, %v78
    %v80 = vshll.u32 2475754826, %v74
    %v81 = vshrl.u32 2131351028, %v75
    %v82 = vor.u32 %v80, %v81
    %v83 = vshll.u32 2131351028, %v74
    %v84 = vshrl.u32 2102212464, %v75
    %v85 = vor.u32 %v83, %v84
    %v86 = vshll.u32 2102212464, %v74
    %v87 = vshrl.u32 920167782, %v75
    %v88 = vor.u32 %v86, %v87
    %v89 = vshll.u32 920167782, %v74
    %v90 = vshrl.u32 1326507024, %v75
    %v91 = vor.u32 %v89, %v90
    %vm92 = vcmp.lt.s32.totalorder %v73, 1
    %vm93 = vcmp.lt.s32.totalorder %v73, 2
    %vm94 = vcmp.lt.s32.totalorder %v73, 3
    %vm95 = vcmp.lt.s32.totalorder %v73, 4
    %v96 = vsel %vm92, %v76, %v79
    %v97 = vsel %vm95, %v85, 2102212464
    %v98 = vsel %vm94, %v82, %v97
    %v99 = vsel %vm93, %v96, %v98
    %v100 = vsel %vm92, %v79, %v82
    %v101 = vsel %vm95, %v88, 920167782
    %v102 = vsel %vm94, %v85, %v101
    %v103 = vsel %vm93, %v100, %v102
    %v104 = vsel %vm92, %v82, %v85
    %v105 = vsel %vm95, %v91, 1326507024
    %v106 = vsel %vm94, %v88, %v105
    %v107 = vsel %vm93, %v104, %v106
    %v108 = vshll.u32 %v68, 8
    %v109 = vmul.u32.u64.compose %v108, %v107
    %v110 = vextract.low.u32 %v109
    %v111 = vextract.high.u32 %v109
    %v112 = vmul.u32.u64.compose %v108, %v103
    %v113 = vextract.low.u32 %v112
    %v114 = vextract.high.u32 %v112
    %v115 = vmul.u32 %v108, %v99
    %v116 = vadd.s32 %v111, %v113
    %vm117 = vc.u32 %v111, %v113
    %v118 = vadd.s32 %v114, 1
    %v119 = vsel %vm117, %v118, %v114
    %v120 = vadd.s32 %v115, %v119
    %v121 = vadd.s32 %v120, 536870912
    %v122 = vshrl.u32 %v121, 30
    %v123 = vshll.u32 %v122, 30
    %v124 = vsub.s32 %v120, %v123
    %vm125 = vcmp.lt.s32.totalorder %v124, 0
    %v126 = vsub.s32 0, %v124
    %v127 = vsel %vm125, %v126, %v124
    %v128 = vclz %v127
    %v129 = vsub.s32 %v128, 2
    %vm130 = vcmp.gt.s32.totalorder 0, %v129
    %v131 = vsel %vm130, 0, %v129
    %v132 = vsub.s32 32, %v131
    %v133 = vshll.u32 %v124, %v131
    %v134 = vshrl.u32 %v116, %v132
    %v135 = vor.u32 %v133, %v134
    %v136 = vsub.s32 4294967266, %v131
    %v137 = vadd.s32 %v136, 127
    %v138 = vshll.u32 %v137, 23
    %v139 = vor.u32 4788187, %v138
    %v140 = vand.u32 2147483647, %v139
    %v142 = vcvt.s32.f32 %v135
    %v143 = vmul.f32 %v142, %v140
    %v144 = vxor.u32 %v143, 2147483648
    %v145 = vsel %vm62, %v144, %v143
    %v146 = vsub.s32 4, %v122
    %v147 = vsel %vm62, %v146, %v122
    %v148 = vsel %vm61, %v59, %v145
    %v149 = vsel %vm61, 0, %v147
    %v150 = vcosq.f32.pop %v148
    %v151 = vsinq.f32.pop %v148
    %vm152 = vweird.f32 %v59
    %v153 = vand.u32 %v149, 3
    %vm154 = vcmp.lt.s32.totalorder %v153, 2
    %vm155 = vcmp.eq.s32.totalorder %v153, 0
    %v156 = vxor.u32 %v151, 2147483648
    %v157 = vsel %vm155, %v150, %v156
    %vm158 = vcmp.eq.s32.totalorder %v153, 2
    %v159 = vxor.u32 %v150, 2147483648
    %v160 = vsel %vm158, %v159, %v151
    %v161 = vsel %vm154, %v157, %v160
    %v162 = vsel %vm152, nan, %v161
    %v163 = vand.u32 2147483647, %v59
    %vm164 = vcmp.le.f32.partialorder %v163, 0.7853982
    %vm165 = vcmp.lt.s32.totalorder %v59, 0
    %v166 = vand.u32 %v59, 2139095040
    %v167 = vshrl.u32 %v166, 23
    %v168 = vsub.s32 %v167, 127
    %v169 = vand.u32 2147483647, %v59
    %v170 = vand.u32 %v169, 8388607
    %v171 = vor.u32 %v170, 8388608
    %v172 = vsub.s32 0, %v171
    %v173 = vadd.s32 %v168, 1
    %vm174 = vcmp.gt.s32.totalorder %v173, 0
    %v175 = vsel %vm174, %v173, 0
    %v176 = vshrl.u32 %v175, 5
    %v177 = vand.u32 %v175, 31
    %v178 = vsub.s32 32, %v177
    %v179 = vshrl.u32 683565275, %v178
    %v180 = vshll.u32 683565275, %v177
    %v181 = vshrl.u32 2475754826, %v178
    %v182 = vor.u32 %v180, %v181
    %v183 = vshll.u32 2475754826, %v177
    %v184 = vshrl.u32 2131351028, %v178
    %v185 = vor.u32 %v183, %v184
    %v186 = vshll.u32 2131351028, %v177
    %v187 = vshrl.u32 2102212464, %v178
    %v188 = vor.u32 %v186, %v187
    %v189 = vshll.u32 2102212464, %v177
    %v190 = vshrl.u32 920167782, %v178
    %v191 = vor.u32 %v189, %v190
    %v192 = vshll.u32 920167782, %v177
    %v193 = vshrl.u32 1326507024, %v178
    %v194 = vor.u32 %v192, %v193
    %vm195 = vcmp.lt.s32.totalorder %v176, 1
    %vm196 = vcmp.lt.s32.totalorder %v176, 2
    %vm197 = vcmp.lt.s32.totalorder %v176, 3
    %vm198 = vcmp.lt.s32.totalorder %v176, 4
    %v199 = vsel %vm195, %v179, %v182
    %v200 = vsel %vm198, %v188, 2102212464
    %v201 = vsel %vm197, %v185, %v200
    %v202 = vsel %vm196, %v199, %v201
    %v203 = vsel %vm195, %v182, %v185
    %v204 = vsel %vm198, %v191, 920167782
    %v205 = vsel %vm197, %v188, %v204
    %v206 = vsel %vm196, %v203, %v205
    %v207 = vsel %vm195, %v185, %v188
    %v208 = vsel %vm198, %v194, 1326507024
    %v209 = vsel %vm197, %v191, %v208
    %v210 = vsel %vm196, %v207, %v209
    %v211 = vshll.u32 %v171, 8
    %v212 = vmul.u32.u64.compose %v211, %v210
    %v213 = vextract.low.u32 %v212
    %v214 = vextract.high.u32 %v212
    %v215 = vmul.u32.u64.compose %v211, %v206
    %v216 = vextract.low.u32 %v215
    %v217 = vextract.high.u32 %v215
    %v218 = vmul.u32 %v211, %v202
    %v219 = vadd.s32 %v214, %v216
    %vm220 = vc.u32 %v214, %v216
    %v221 = vadd.s32 %v217, 1
    %v222 = vsel %vm220, %v221, %v217
    %v223 = vadd.s32 %v218, %v222
    %v224 = vadd.s32 %v223, 536870912
    %v225 = vshrl.u32 %v224, 30
    %v226 = vshll.u32 %v225, 30
    %v227 = vsub.s32 %v223, %v226
    %vm228 = vcmp.lt.s32.totalorder %v227, 0
    %v229 = vsub.s32 0, %v227
    %v230 = vsel %vm228, %v229, %v227
    %v231 = vclz %v230
    %v232 = vsub.s32 %v231, 2
    %vm233 = vcmp.gt.s32.totalorder 0, %v232
    %v234 = vsel %vm233, 0, %v232
    %v235 = vsub.s32 32, %v234
    %v236 = vshll.u32 %v227, %v234
    %v237 = vshrl.u32 %v219, %v235
    %v238 = vor.u32 %v236, %v237
    %v239 = vsub.s32 4294967266, %v234
    %v240 = vadd.s32 %v239, 127
    %v241 = vshll.u32 %v240, 23
    %v242 = vor.u32 4788187, %v241
    %v243 = vand.u32 2147483647, %v242
    %v245 = vcvt.s32.f32 %v238
    %v246 = vmul.f32 %v245, %v243
    %v247 = vxor.u32 %v246, 2147483648
    %v248 = vsel %vm165, %v247, %v246
    %v249 = vsub.s32 4, %v225
    %v250 = vsel %vm165, %v249, %v225
    %v251 = vsel %vm164, %v59, %v248
    %v252 = vsel %vm164, 0, %v250
    %v253 = vcosq.f32.pop %v251
    %v254 = vsinq.f32.pop %v251
    %vm255 = vweird.f32 %v59
    %v256 = vadd.s32 %v252, 3
    %v257 = vand.u32 %v256, 3
    %vm258 = vcmp.lt.s32.totalorder %v257, 2
    %vm259 = vcmp.eq.s32.totalorder %v257, 0
    %v260 = vxor.u32 %v254, 2147483648
    %v261 = vsel %vm259, %v253, %v260
    %vm262 = vcmp.eq.s32.totalorder %v257, 2
    %v263 = vxor.u32 %v253, 2147483648
    %v264 = vsel %vm262, %v263, %v254
    %v265 = vsel %vm258, %v261, %v264
    %v266 = vsel %vm255, nan, %v265
    %v267 = vld [vmem:[%s4] sm:$0xff]
    %v268 = vld [vmem:[%s4 + $0x8] sm:$0xff]
    %v269 = vld [vmem:[%s4 + $0x10] sm:$0xff]
    %v270 = vld [vmem:[%s4 + $0x18] sm:$0xff]
    %v271 = vld [vmem:[%s4 + $0x20] sm:$0xff]
    %v272 = vld [vmem:[%s4 + $0x28] sm:$0xff]
    %v273 = vld [vmem:[%s4 + $0x30] sm:$0xff]
    %v274 = vld [vmem:[%s4 + $0x38] sm:$0xff]
    %v275 = vld [vmem:[%s4 + $0x40] sm:$0xff]
    %v276 = vld [vmem:[%s4 + $0x48] sm:$0xff]
    %v277 = vld [vmem:[%s4 + $0x50] sm:$0xff]
    %v278 = vld [vmem:[%s4 + $0x58] sm:$0xff]
    %v279 = vld [vmem:[%s4 + $0x60] sm:$0xff]
    %v280 = vld [vmem:[%s4 + $0x68] sm:$0xff]
    %v281 = vld [vmem:[%s4 + $0x70] sm:$0xff]
    %v282 = vld [vmem:[%s4 + $0x78] sm:$0xff]
    %v283 = vld [vmem:[%s4 + $0x80] sm:$0xff]
    %v284 = vld [vmem:[%s4 + $0x88] sm:$0xff]
    %v285 = vld [vmem:[%s4 + $0x90] sm:$0xff]
    %v286 = vld [vmem:[%s4 + $0x98] sm:$0xff]
    %v287 = vld [vmem:[%s4 + $0xa0] sm:$0xff]
    %v288 = vld [vmem:[%s4 + $0xa8] sm:$0xff]
    %v289 = vld [vmem:[%s4 + $0xb0] sm:$0xff]
    %v290 = vld [vmem:[%s4 + $0xb8] sm:$0xff]
    %v291 = vld [vmem:[%s4 + $0xc0] sm:$0xff]
    %v292 = vld [vmem:[%s4 + $0xc8] sm:$0xff]
    %v293 = vld [vmem:[%s4 + $0xd0] sm:$0xff]
    %v294 = vld [vmem:[%s4 + $0xd8] sm:$0xff]
    %v295 = vld [vmem:[%s4 + $0xe0] sm:$0xff]
    %v296 = vld [vmem:[%s4 + $0xe8] sm:$0xff]
    %v297 = vld [vmem:[%s4 + $0xf0] sm:$0xff]
    %v298 = vld [vmem:[%s4 + $0xf8] sm:$0xff]
    %299 = vmatprep.subr.mxu0 0.0
    %300 = vmatpush1.msra.mxu0 %v298
    %301 = vmatprep.subr.mxu0 0.0
    %302 = vmatpush1.msra.mxu0 %v297
    %303 = vmatprep.subr.mxu0 0.0
    %304 = vmatpush1.msra.mxu0 %v296
    %305 = vmatprep.subr.mxu0 0.0
    %306 = vmatpush1.msra.mxu0 %v295
    %307 = vmatprep.subr.mxu0 0.0
    %308 = vmatpush1.msra.mxu0 %v294
    %309 = vmatprep.subr.mxu0 0.0
    %310 = vmatpush1.msra.mxu0 %v293
    %311 = vmatprep.subr.mxu0 0.0
    %312 = vmatpush1.msra.mxu0 %v292
    %313 = vmatprep.subr.mxu0 0.0
    %314 = vmatpush1.msra.mxu0 %v291
    %315 = vmatprep.subr.mxu0 0.0
    %316 = vmatpush1.msra.mxu0 %v290
    %317 = vmatprep.subr.mxu0 0.0
    %318 = vmatpush1.msra.mxu0 %v289
    %319 = vmatprep.subr.mxu0 0.0
    %320 = vmatpush1.msra.mxu0 %v288
    %321 = vmatprep.subr.mxu0 0.0
    %322 = vmatpush1.msra.mxu0 %v287
    %323 = vmatprep.subr.mxu0 0.0
    %324 = vmatpush1.msra.mxu0 %v286
    %325 = vmatprep.subr.mxu0 0.0
    %326 = vmatpush1.msra.mxu0 %v285
    %327 = vmatprep.subr.mxu0 0.0
    %328 = vmatpush1.msra.mxu0 %v284
    %329 = vmatprep.subr.mxu0 0.0
    %330 = vmatpush1.msra.mxu0 %v283
    %331 = vmatprep.subr.mxu0 0.0
    %332 = vmatpush2.msra.mxu0 0.0
    %333 = vmatprep.subr.mxu0 0.0
    %334 = vmatpush2.msra.mxu0 0.0
    %335 = vmatprep.subr.mxu0 0.0
    %336 = vmatpush2.msra.mxu0 0.0
    %337 = vmatprep.subr.mxu0 0.0
    %338 = vmatpush2.msra.mxu0 0.0
    %339 = vmatprep.subr.mxu0 0.0
    %340 = vmatpush2.msra.mxu0 0.0
    %341 = vmatprep.subr.mxu0 0.0
    %342 = vmatpush2.msra.mxu0 0.0
    %343 = vmatprep.subr.mxu0 0.0
    %344 = vmatpush2.msra.mxu0 0.0
    %345 = vmatprep.subr.mxu0 0.0
    %346 = vmatpush2.msra.mxu0 0.0
    %347 = vmatprep.subr.mxu0 0.0
    %348 = vmatpush2.msra.mxu0 0.0
    %349 = vmatprep.subr.mxu0 0.0
    %350 = vmatpush2.msra.mxu0 0.0
    %351 = vmatprep.subr.mxu0 0.0
    %352 = vmatpush2.msra.mxu0 0.0
    %353 = vmatprep.subr.mxu0 0.0
    %354 = vmatpush2.msra.mxu0 0.0
    %355 = vmatprep.subr.mxu0 0.0
    %356 = vmatpush2.msra.mxu0 0.0
    %357 = vmatprep.subr.mxu0 0.0
    %358 = vmatpush2.msra.mxu0 0.0
    %359 = vmatprep.subr.mxu0 0.0
    %360 = vmatpush2.msra.mxu0 0.0
    %361 = vmatprep.subr.mxu0 0.0
    %362 = vmatpush2.msra.mxu0 0.0
    %363 = vmatprep.mubr.f32.mxu0 0.0
    %364 = vmatmul.mubr.f32.gmra.mxu0 %v266
    %v365 = vpop.f32.mrf.mxu0
    %v366 = vadd.f32 0.0, %v365
    %v367 = vpop.f32.mrf.mxu0
    %368 = vdwg.mxu0
    %369 = vmatprep.subr.mxu0 0.0
    %370 = vmatpush1.msra.mxu0 %v282
    %371 = vmatprep.subr.mxu0 0.0
    %372 = vmatpush1.msra.mxu0 %v281
    %373 = vmatprep.subr.mxu0 0.0
    %374 = vmatpush1.msra.mxu0 %v280
    %375 = vmatprep.subr.mxu0 0.0
    %376 = vmatpush1.msra.mxu0 %v279
    %377 = vmatprep.subr.mxu0 0.0
    %378 = vmatpush1.msra.mxu0 %v278
    %379 = vmatprep.subr.mxu0 0.0
    %380 = vmatpush1.msra.mxu0 %v277
    %381 = vmatprep.subr.mxu0 0.0
    %382 = vmatpush1.msra.mxu0 %v276
    %383 = vmatprep.subr.mxu0 0.0
    %384 = vmatpush1.msra.mxu0 %v275
    %385 = vmatprep.subr.mxu0 0.0
    %386 = vmatpush1.msra.mxu0 %v274
    %387 = vmatprep.subr.mxu0 0.0
    %388 = vmatpush1.msra.mxu0 %v273
    %389 = vmatprep.subr.mxu0 0.0
    %390 = vmatpush1.msra.mxu0 %v272
    %391 = vmatprep.subr.mxu0 0.0
    %392 = vmatpush1.msra.mxu0 %v271
    %393 = vmatprep.subr.mxu0 0.0
    %394 = vmatpush1.msra.mxu0 %v270
    %395 = vmatprep.subr.mxu0 0.0
    %396 = vmatpush1.msra.mxu0 %v269
    %397 = vmatprep.subr.mxu0 0.0
    %398 = vmatpush1.msra.mxu0 %v268
    %399 = vmatprep.subr.mxu0 0.0
    %400 = vmatpush1.msra.mxu0 %v267
    %401 = vmatprep.subr.mxu0 0.0
    %402 = vmatpush2.msra.mxu0 0.0
    %403 = vmatprep.subr.mxu0 0.0
    %404 = vmatpush2.msra.mxu0 0.0
    %405 = vmatprep.subr.mxu0 0.0
    %406 = vmatpush2.msra.mxu0 0.0
    %407 = vmatprep.subr.mxu0 0.0
    %408 = vmatpush2.msra.mxu0 0.0
    %409 = vmatprep.subr.mxu0 0.0
    %410 = vmatpush2.msra.mxu0 0.0
    %411 = vmatprep.subr.mxu0 0.0
    %412 = vmatpush2.msra.mxu0 0.0
    %413 = vmatprep.subr.mxu0 0.0
    %414 = vmatpush2.msra.mxu0 0.0
    %415 = vmatprep.subr.mxu0 0.0
    %416 = vmatpush2.msra.mxu0 0.0
    %417 = vmatprep.subr.mxu0 0.0
    %418 = vmatpush2.msra.mxu0 0.0
    %419 = vmatprep.subr.mxu0 0.0
    %420 = vmatpush2.msra.mxu0 0.0
    %421 = vmatprep.subr.mxu0 0.0
    %422 = vmatpush2.msra.mxu0 0.0
    %423 = vmatprep.subr.mxu0 0.0
    %424 = vmatpush2.msra.mxu0 0.0
    %425 = vmatprep.subr.mxu0 0.0
    %426 = vmatpush2.msra.mxu0 0.0
    %427 = vmatprep.subr.mxu0 0.0
    %428 = vmatpush2.msra.mxu0 0.0
    %429 = vmatprep.subr.mxu0 0.0
    %430 = vmatpush2.msra.mxu0 0.0
    %431 = vmatprep.subr.mxu0 0.0
    %432 = vmatpush2.msra.mxu0 0.0
    %433 = vmatprep.mubr.f32.mxu0 0.0
    %434 = vmatmul.mubr.f32.gmra.mxu0 %v162
    %v435 = vpop.f32.mrf.mxu0
    %v436 = vadd.f32 %v366, %v435
    %v437 = vpop.f32.mrf.mxu0
    %438 = vdwg.mxu0
    %v439 = vld [vmem:[%s5] sm:$0x1]
    %v441 = vlaneseq
    %v442 = vshrl.u32 %v441, 7
    %v443 = vsub.s32 0, %v442
    %v444 = vrot.slane %v439, %v443
    %v446 = vadd.f32 %v436, %v444
    %v447 = vxor.u32 %v446, 2147483648
    %v448 = vmul.f32 %v447, 1.442695
    %v449 = vpow.pop %v448
    %v450 = vadd.f32 %v449, 1.0
    %v451 = vrcp.pop %v450
    %v452 = vmul.f32 1.0, %v451
    %v453 = vmul.f32 %v446, %v452
    %v454 = vld [vmem:[%s6] sm:$0xff]
    %v455 = vld [vmem:[%s6 + $0x8] sm:$0xff]
    %v456 = vld [vmem:[%s6 + $0x10] sm:$0xff]
    %v457 = vld [vmem:[%s6 + $0x18] sm:$0xff]
    %v458 = vld [vmem:[%s7] sm:$0x1]
    %v460 = vlaneseq
    %v461 = vshrl.u32 %v460, 7
    %v462 = vsub.s32 0, %v461
    %v463 = vrot.slane %v458, %v462
    %vm465 = vcmask 261120
    %v467 = vsel %vm465, %v453, 0
    %469 = vmatprep.subr.mxu0 0.0
    %470 = vmatpush1.msra.mxu0 0.0
    %471 = vmatprep.subr.mxu0 0.0
    %472 = vmatpush1.msra.mxu0 0.0
    %473 = vmatprep.subr.mxu0 0.0
    %474 = vmatpush1.msra.mxu0 0.0
    %475 = vmatprep.subr.mxu0 0.0
    %476 = vmatpush1.msra.mxu0 0.0
    %477 = vmatprep.subr.mxu0 0.0
    %478 = vmatpush1.msra.mxu0 0.0
    %479 = vmatprep.subr.mxu0 0.0
    %480 = vmatpush1.msra.mxu0 0.0
    %481 = vmatprep.subr.mxu0 0.0
    %482 = vmatpush1.msra.mxu0 0.0
    %483 = vmatprep.subr.mxu0 0.0
    %484 = vmatpush1.msra.mxu0 0.0
    %485 = vmatprep.subr.mxu0 0.0
    %486 = vmatpush1.msra.mxu0 0.0
    %487 = vmatprep.subr.mxu0 0.0
    %488 = vmatpush1.msra.mxu0 0.0
    %489 = vmatprep.subr.mxu0 0.0
    %490 = vmatpush1.msra.mxu0 0.0
    %491 = vmatprep.subr.mxu0 0.0
    %492 = vmatpush1.msra.mxu0 0.0
    %493 = vmatprep.subr.mxu0 0.0
    %494 = vmatpush1.msra.mxu0 %v457
    %495 = vmatprep.subr.mxu0 0.0
    %496 = vmatpush1.msra.mxu0 %v456
    %497 = vmatprep.subr.mxu0 0.0
    %498 = vmatpush1.msra.mxu0 %v455
    %499 = vmatprep.subr.mxu0 0.0
    %500 = vmatpush1.msra.mxu0 %v454
    %501 = vmatprep.subr.mxu0 0.0
    %502 = vmatpush2.msra.mxu0 0.0
    %503 = vmatprep.subr.mxu0 0.0
    %504 = vmatpush2.msra.mxu0 0.0
    %505 = vmatprep.subr.mxu0 0.0
    %506 = vmatpush2.msra.mxu0 0.0
    %507 = vmatprep.subr.mxu0 0.0
    %508 = vmatpush2.msra.mxu0 0.0
    %509 = vmatprep.subr.mxu0 0.0
    %510 = vmatpush2.msra.mxu0 0.0
    %511 = vmatprep.subr.mxu0 0.0
    %512 = vmatpush2.msra.mxu0 0.0
    %513 = vmatprep.subr.mxu0 0.0
    %514 = vmatpush2.msra.mxu0 0.0
    %515 = vmatprep.subr.mxu0 0.0
    %516 = vmatpush2.msra.mxu0 0.0
    %517 = vmatprep.subr.mxu0 0.0
    %518 = vmatpush2.msra.mxu0 0.0
    %519 = vmatprep.subr.mxu0 0.0
    %520 = vmatpush2.msra.mxu0 0.0
    %521 = vmatprep.subr.mxu0 0.0
    %522 = vmatpush2.msra.mxu0 0.0
    %523 = vmatprep.subr.mxu0 0.0
    %524 = vmatpush2.msra.mxu0 0.0
    %525 = vmatprep.subr.mxu0 0.0
    %526 = vmatpush2.msra.mxu0 0.0
    %527 = vmatprep.subr.mxu0 0.0
    %528 = vmatpush2.msra.mxu0 0.0
    %529 = vmatprep.subr.mxu0 0.0
    %530 = vmatpush2.msra.mxu0 0.0
    %531 = vmatprep.subr.mxu0 0.0
    %532 = vmatpush2.msra.mxu0 0.0
    %533 = vmatprep.mubr.f32.mxu0 0.0
    %534 = vmatmul.mubr.f32.gmra.mxu0 %v467
    %v535 = vpop.f32.mrf.mxu0
    %v536 = vadd.f32 %v463, %v535
    %v537 = vpop.f32.mrf.mxu0
    %538 = vdwg.mxu0
    %v539 = vld [vmem:[%s1] sm:$0x3]
    %v540 = vmul.f32 %v539, 1000.0
    %542 = vset.pattern.permute.xlu0 0
    %543 = vperm.xlu0 %542, %v540
    %v544 = vpop.permute.xlu0 %543
    %v546 = vmul.f32 %v544, %v57
    %v547 = vand.u32 2147483647, %v546
    %vm548 = vcmp.le.f32.partialorder %v547, 0.7853982
    %vm549 = vcmp.lt.s32.totalorder %v546, 0
    %v550 = vand.u32 %v546, 2139095040
    %v551 = vshrl.u32 %v550, 23
    %v552 = vsub.s32 %v551, 127
    %v553 = vand.u32 2147483647, %v546
    %v554 = vand.u32 %v553, 8388607
    %v555 = vor.u32 %v554, 8388608
    %v556 = vsub.s32 0, %v555
    %v557 = vadd.s32 %v552, 1
    %vm558 = vcmp.gt.s32.totalorder %v557, 0
    %v559 = vsel %vm558, %v557, 0
    %v560 = vshrl.u32 %v559, 5
    %v561 = vand.u32 %v559, 31
    %v562 = vsub.s32 32, %v561
    %v563 = vshrl.u32 683565275, %v562
    %v564 = vshll.u32 683565275, %v561
    %v565 = vshrl.u32 2475754826, %v562
    %v566 = vor.u32 %v564, %v565
    %v567 = vshll.u32 2475754826, %v561
    %v568 = vshrl.u32 2131351028, %v562
    %v569 = vor.u32 %v567, %v568
    %v570 = vshll.u32 2131351028, %v561
    %v571 = vshrl.u32 2102212464, %v562
    %v572 = vor.u32 %v570, %v571
    %v573 = vshll.u32 2102212464, %v561
    %v574 = vshrl.u32 920167782, %v562
    %v575 = vor.u32 %v573, %v574
    %v576 = vshll.u32 920167782, %v561
    %v577 = vshrl.u32 1326507024, %v562
    %v578 = vor.u32 %v576, %v577
    %vm579 = vcmp.lt.s32.totalorder %v560, 1
    %vm580 = vcmp.lt.s32.totalorder %v560, 2
    %vm581 = vcmp.lt.s32.totalorder %v560, 3
    %vm582 = vcmp.lt.s32.totalorder %v560, 4
    %v583 = vsel %vm579, %v563, %v566
    %v584 = vsel %vm582, %v572, 2102212464
    %v585 = vsel %vm581, %v569, %v584
    %v586 = vsel %vm580, %v583, %v585
    %v587 = vsel %vm579, %v566, %v569
    %v588 = vsel %vm582, %v575, 920167782
    %v589 = vsel %vm581, %v572, %v588
    %v590 = vsel %vm580, %v587, %v589
    %v591 = vsel %vm579, %v569, %v572
    %v592 = vsel %vm582, %v578, 1326507024
    %v593 = vsel %vm581, %v575, %v592
    %v594 = vsel %vm580, %v591, %v593
    %v595 = vshll.u32 %v555, 8
    %v596 = vmul.u32.u64.compose %v595, %v594
    %v597 = vextract.low.u32 %v596
    %v598 = vextract.high.u32 %v596
    %v599 = vmul.u32.u64.compose %v595, %v590
    %v600 = vextract.low.u32 %v599
    %v601 = vextract.high.u32 %v599
    %v602 = vmul.u32 %v595, %v586
    %v603 = vadd.s32 %v598, %v600
    %vm604 = vc.u32 %v598, %v600
    %v605 = vadd.s32 %v601, 1
    %v606 = vsel %vm604, %v605, %v601
    %v607 = vadd.s32 %v602, %v606
    %v608 = vadd.s32 %v607, 536870912
    %v609 = vshrl.u32 %v608, 30
    %v610 = vshll.u32 %v609, 30
    %v611 = vsub.s32 %v607, %v610
    %vm612 = vcmp.lt.s32.totalorder %v611, 0
    %v613 = vsub.s32 0, %v611
    %v614 = vsel %vm612, %v613, %v611
    %v615 = vclz %v614
    %v616 = vsub.s32 %v615, 2
    %vm617 = vcmp.gt.s32.totalorder 0, %v616
    %v618 = vsel %vm617, 0, %v616
    %v619 = vsub.s32 32, %v618
    %v620 = vshll.u32 %v611, %v618
    %v621 = vshrl.u32 %v603, %v619
    %v622 = vor.u32 %v620, %v621
    %v623 = vsub.s32 4294967266, %v618
    %v624 = vadd.s32 %v623, 127
    %v625 = vshll.u32 %v624, 23
    %v626 = vor.u32 4788187, %v625
    %v627 = vand.u32 2147483647, %v626
    %v629 = vcvt.s32.f32 %v622
    %v630 = vmul.f32 %v629, %v627
    %v631 = vxor.u32 %v630, 2147483648
    %v632 = vsel %vm549, %v631, %v630
    %v633 = vsub.s32 4, %v609
    %v634 = vsel %vm549, %v633, %v609
    %v635 = vsel %vm548, %v546, %v632
    %v636 = vsel %vm548, 0, %v634
    %v637 = vcosq.f32.pop %v635
    %v638 = vsinq.f32.pop %v635
    %vm639 = vweird.f32 %v546
    %v640 = vand.u32 %v636, 3
    %vm641 = vcmp.lt.s32.totalorder %v640, 2
    %vm642 = vcmp.eq.s32.totalorder %v640, 0
    %v643 = vxor.u32 %v638, 2147483648
    %v644 = vsel %vm642, %v637, %v643
    %vm645 = vcmp.eq.s32.totalorder %v640, 2
    %v646 = vxor.u32 %v637, 2147483648
    %v647 = vsel %vm645, %v646, %v638
    %v648 = vsel %vm641, %v644, %v647
    %v649 = vsel %vm639, nan, %v648
    %v650 = vand.u32 2147483647, %v546
    %vm651 = vcmp.le.f32.partialorder %v650, 0.7853982
    %vm652 = vcmp.lt.s32.totalorder %v546, 0
    %v653 = vand.u32 %v546, 2139095040
    %v654 = vshrl.u32 %v653, 23
    %v655 = vsub.s32 %v654, 127
    %v656 = vand.u32 2147483647, %v546
    %v657 = vand.u32 %v656, 8388607
    %v658 = vor.u32 %v657, 8388608
    %v659 = vsub.s32 0, %v658
    %v660 = vadd.s32 %v655, 1
    %vm661 = vcmp.gt.s32.totalorder %v660, 0
    %v662 = vsel %vm661, %v660, 0
    %v663 = vshrl.u32 %v662, 5
    %v664 = vand.u32 %v662, 31
    %v665 = vsub.s32 32, %v664
    %v666 = vshrl.u32 683565275, %v665
    %v667 = vshll.u32 683565275, %v664
    %v668 = vshrl.u32 2475754826, %v665
    %v669 = vor.u32 %v667, %v668
    %v670 = vshll.u32 2475754826, %v664
    %v671 = vshrl.u32 2131351028, %v665
    %v672 = vor.u32 %v670, %v671
    %v673 = vshll.u32 2131351028, %v664
    %v674 = vshrl.u32 2102212464, %v665
    %v675 = vor.u32 %v673, %v674
    %v676 = vshll.u32 2102212464, %v664
    %v677 = vshrl.u32 920167782, %v665
    %v678 = vor.u32 %v676, %v677
    %v679 = vshll.u32 920167782, %v664
    %v680 = vshrl.u32 1326507024, %v665
    %v681 = vor.u32 %v679, %v680
    %vm682 = vcmp.lt.s32.totalorder %v663, 1
    %vm683 = vcmp.lt.s32.totalorder %v663, 2
    %vm684 = vcmp.lt.s32.totalorder %v663, 3
    %vm685 = vcmp.lt.s32.totalorder %v663, 4
    %v686 = vsel %vm682, %v666, %v669
    %v687 = vsel %vm685, %v675, 2102212464
    %v688 = vsel %vm684, %v672, %v687
    %v689 = vsel %vm683, %v686, %v688
    %v690 = vsel %vm682, %v669, %v672
    %v691 = vsel %vm685, %v678, 920167782
    %v692 = vsel %vm684, %v675, %v691
    %v693 = vsel %vm683, %v690, %v692
    %v694 = vsel %vm682, %v672, %v675
    %v695 = vsel %vm685, %v681, 1326507024
    %v696 = vsel %vm684, %v678, %v695
    %v697 = vsel %vm683, %v694, %v696
    %v698 = vshll.u32 %v658, 8
    %v699 = vmul.u32.u64.compose %v698, %v697
    %v700 = vextract.low.u32 %v699
    %v701 = vextract.high.u32 %v699
    %v702 = vmul.u32.u64.compose %v698, %v693
    %v703 = vextract.low.u32 %v702
    %v704 = vextract.high.u32 %v702
    %v705 = vmul.u32 %v698, %v689
    %v706 = vadd.s32 %v701, %v703
    %vm707 = vc.u32 %v701, %v703
    %v708 = vadd.s32 %v704, 1
    %v709 = vsel %vm707, %v708, %v704
    %v710 = vadd.s32 %v705, %v709
    %v711 = vadd.s32 %v710, 536870912
    %v712 = vshrl.u32 %v711, 30
    %v713 = vshll.u32 %v712, 30
    %v714 = vsub.s32 %v710, %v713
    %vm715 = vcmp.lt.s32.totalorder %v714, 0
    %v716 = vsub.s32 0, %v714
    %v717 = vsel %vm715, %v716, %v714
    %v718 = vclz %v717
    %v719 = vsub.s32 %v718, 2
    %vm720 = vcmp.gt.s32.totalorder 0, %v719
    %v721 = vsel %vm720, 0, %v719
    %v722 = vsub.s32 32, %v721
    %v723 = vshll.u32 %v714, %v721
    %v724 = vshrl.u32 %v706, %v722
    %v725 = vor.u32 %v723, %v724
    %v726 = vsub.s32 4294967266, %v721
    %v727 = vadd.s32 %v726, 127
    %v728 = vshll.u32 %v727, 23
    %v729 = vor.u32 4788187, %v728
    %v730 = vand.u32 2147483647, %v729
    %v732 = vcvt.s32.f32 %v725
    %v733 = vmul.f32 %v732, %v730
    %v734 = vxor.u32 %v733, 2147483648
    %v735 = vsel %vm652, %v734, %v733
    %v736 = vsub.s32 4, %v712
    %v737 = vsel %vm652, %v736, %v712
    %v738 = vsel %vm651, %v546, %v735
    %v739 = vsel %vm651, 0, %v737
    %v740 = vcosq.f32.pop %v738
    %v741 = vsinq.f32.pop %v738
    %vm742 = vweird.f32 %v546
    %v743 = vadd.s32 %v739, 3
    %v744 = vand.u32 %v743, 3
    %vm745 = vcmp.lt.s32.totalorder %v744, 2
    %vm746 = vcmp.eq.s32.totalorder %v744, 0
    %v747 = vxor.u32 %v741, 2147483648
    %v748 = vsel %vm746, %v740, %v747
    %vm749 = vcmp.eq.s32.totalorder %v744, 2
    %v750 = vxor.u32 %v740, 2147483648
    %v751 = vsel %vm749, %v750, %v741
    %v752 = vsel %vm745, %v748, %v751
    %v753 = vsel %vm742, nan, %v752
    %v754 = vld [vmem:[%s8] sm:$0xff]
    %v755 = vld [vmem:[%s8 + $0x8] sm:$0xff]
    %v756 = vld [vmem:[%s8 + $0x10] sm:$0xff]
    %v757 = vld [vmem:[%s8 + $0x18] sm:$0xff]
    %v758 = vld [vmem:[%s8 + $0x20] sm:$0xff]
    %v759 = vld [vmem:[%s8 + $0x28] sm:$0xff]
    %v760 = vld [vmem:[%s8 + $0x30] sm:$0xff]
    %v761 = vld [vmem:[%s8 + $0x38] sm:$0xff]
    %v762 = vld [vmem:[%s8 + $0x40] sm:$0xff]
    %v763 = vld [vmem:[%s8 + $0x48] sm:$0xff]
    %v764 = vld [vmem:[%s8 + $0x50] sm:$0xff]
    %v765 = vld [vmem:[%s8 + $0x58] sm:$0xff]
    %v766 = vld [vmem:[%s8 + $0x60] sm:$0xff]
    %v767 = vld [vmem:[%s8 + $0x68] sm:$0xff]
    %v768 = vld [vmem:[%s8 + $0x70] sm:$0xff]
    %v769 = vld [vmem:[%s8 + $0x78] sm:$0xff]
    %v770 = vld [vmem:[%s8 + $0x80] sm:$0xff]
    %v771 = vld [vmem:[%s8 + $0x88] sm:$0xff]
    %v772 = vld [vmem:[%s8 + $0x90] sm:$0xff]
    %v773 = vld [vmem:[%s8 + $0x98] sm:$0xff]
    %v774 = vld [vmem:[%s8 + $0xa0] sm:$0xff]
    %v775 = vld [vmem:[%s8 + $0xa8] sm:$0xff]
    %v776 = vld [vmem:[%s8 + $0xb0] sm:$0xff]
    %v777 = vld [vmem:[%s8 + $0xb8] sm:$0xff]
    %v778 = vld [vmem:[%s8 + $0xc0] sm:$0xff]
    %v779 = vld [vmem:[%s8 + $0xc8] sm:$0xff]
    %v780 = vld [vmem:[%s8 + $0xd0] sm:$0xff]
    %v781 = vld [vmem:[%s8 + $0xd8] sm:$0xff]
    %v782 = vld [vmem:[%s8 + $0xe0] sm:$0xff]
    %v783 = vld [vmem:[%s8 + $0xe8] sm:$0xff]
    %v784 = vld [vmem:[%s8 + $0xf0] sm:$0xff]
    %v785 = vld [vmem:[%s8 + $0xf8] sm:$0xff]
    %786 = vmatprep.subr.mxu0 0.0
    %787 = vmatpush1.msra.mxu0 %v785
    %788 = vmatprep.subr.mxu0 0.0
    %789 = vmatpush1.msra.mxu0 %v784
    %790 = vmatprep.subr.mxu0 0.0
    %791 = vmatpush1.msra.mxu0 %v783
    %792 = vmatprep.subr.mxu0 0.0
    %793 = vmatpush1.msra.mxu0 %v782
    %794 = vmatprep.subr.mxu0 0.0
    %795 = vmatpush1.msra.mxu0 %v781
    %796 = vmatprep.subr.mxu0 0.0
    %797 = vmatpush1.msra.mxu0 %v780
    %798 = vmatprep.subr.mxu0 0.0
    %799 = vmatpush1.msra.mxu0 %v779
    %800 = vmatprep.subr.mxu0 0.0
    %801 = vmatpush1.msra.mxu0 %v778
    %802 = vmatprep.subr.mxu0 0.0
    %803 = vmatpush1.msra.mxu0 %v777
    %804 = vmatprep.subr.mxu0 0.0
    %805 = vmatpush1.msra.mxu0 %v776
    %806 = vmatprep.subr.mxu0 0.0
    %807 = vmatpush1.msra.mxu0 %v775
    %808 = vmatprep.subr.mxu0 0.0
    %809 = vmatpush1.msra.mxu0 %v774
    %810 = vmatprep.subr.mxu0 0.0
    %811 = vmatpush1.msra.mxu0 %v773
    %812 = vmatprep.subr.mxu0 0.0
    %813 = vmatpush1.msra.mxu0 %v772
    %814 = vmatprep.subr.mxu0 0.0
    %815 = vmatpush1.msra.mxu0 %v771
    %816 = vmatprep.subr.mxu0 0.0
    %817 = vmatpush1.msra.mxu0 %v770
    %818 = vmatprep.subr.mxu0 0.0
    %819 = vmatpush2.msra.mxu0 0.0
    %820 = vmatprep.subr.mxu0 0.0
    %821 = vmatpush2.msra.mxu0 0.0
    %822 = vmatprep.subr.mxu0 0.0
    %823 = vmatpush2.msra.mxu0 0.0
    %824 = vmatprep.subr.mxu0 0.0
    %825 = vmatpush2.msra.mxu0 0.0
    %826 = vmatprep.subr.mxu0 0.0
    %827 = vmatpush2.msra.mxu0 0.0
    %828 = vmatprep.subr.mxu0 0.0
    %829 = vmatpush2.msra.mxu0 0.0
    %830 = vmatprep.subr.mxu0 0.0
    %831 = vmatpush2.msra.mxu0 0.0
    %832 = vmatprep.subr.mxu0 0.0
    %833 = vmatpush2.msra.mxu0 0.0
    %834 = vmatprep.subr.mxu0 0.0
    %835 = vmatpush2.msra.mxu0 0.0
    %836 = vmatprep.subr.mxu0 0.0
    %837 = vmatpush2.msra.mxu0 0.0
    %838 = vmatprep.subr.mxu0 0.0
    %839 = vmatpush2.msra.mxu0 0.0
    %840 = vmatprep.subr.mxu0 0.0
    %841 = vmatpush2.msra.mxu0 0.0
    %842 = vmatprep.subr.mxu0 0.0
    %843 = vmatpush2.msra.mxu0 0.0
    %844 = vmatprep.subr.mxu0 0.0
    %845 = vmatpush2.msra.mxu0 0.0
    %846 = vmatprep.subr.mxu0 0.0
    %847 = vmatpush2.msra.mxu0 0.0
    %848 = vmatprep.subr.mxu0 0.0
    %849 = vmatpush2.msra.mxu0 0.0
    %850 = vmatprep.mubr.f32.mxu0 0.0
    %851 = vmatmul.mubr.f32.gmra.mxu0 %v753
    %v852 = vpop.f32.mrf.mxu0
    %v853 = vadd.f32 0.0, %v852
    %v854 = vpop.f32.mrf.mxu0
    %855 = vdwg.mxu0
    %856 = vmatprep.subr.mxu0 0.0
    %857 = vmatpush1.msra.mxu0 %v769
    %858 = vmatprep.subr.mxu0 0.0
    %859 = vmatpush1.msra.mxu0 %v768
    %860 = vmatprep.subr.mxu0 0.0
    %861 = vmatpush1.msra.mxu0 %v767
    %862 = vmatprep.subr.mxu0 0.0
    %863 = vmatpush1.msra.mxu0 %v766
    %864 = vmatprep.subr.mxu0 0.0
    %865 = vmatpush1.msra.mxu0 %v765
    %866 = vmatprep.subr.mxu0 0.0
    %867 = vmatpush1.msra.mxu0 %v764
    %868 = vmatprep.subr.mxu0 0.0
    %869 = vmatpush1.msra.mxu0 %v763
    %870 = vmatprep.subr.mxu0 0.0
    %871 = vmatpush1.msra.mxu0 %v762
    %872 = vmatprep.subr.mxu0 0.0
    %873 = vmatpush1.msra.mxu0 %v761
    %874 = vmatprep.subr.mxu0 0.0
    %875 = vmatpush1.msra.mxu0 %v760
    %876 = vmatprep.subr.mxu0 0.0
    %877 = vmatpush1.msra.mxu0 %v759
    %878 = vmatprep.subr.mxu0 0.0
    %879 = vmatpush1.msra.mxu0 %v758
    %880 = vmatprep.subr.mxu0 0.0
    %881 = vmatpush1.msra.mxu0 %v757
    %882 = vmatprep.subr.mxu0 0.0
    %883 = vmatpush1.msra.mxu0 %v756
    %884 = vmatprep.subr.mxu0 0.0
    %885 = vmatpush1.msra.mxu0 %v755
    %886 = vmatprep.subr.mxu0 0.0
    %887 = vmatpush1.msra.mxu0 %v754
    %888 = vmatprep.subr.mxu0 0.0
    %889 = vmatpush2.msra.mxu0 0.0
    %890 = vmatprep.subr.mxu0 0.0
    %891 = vmatpush2.msra.mxu0 0.0
    %892 = vmatprep.subr.mxu0 0.0
    %893 = vmatpush2.msra.mxu0 0.0
    %894 = vmatprep.subr.mxu0 0.0
    %895 = vmatpush2.msra.mxu0 0.0
    %896 = vmatprep.subr.mxu0 0.0
    %897 = vmatpush2.msra.mxu0 0.0
    %898 = vmatprep.subr.mxu0 0.0
    %899 = vmatpush2.msra.mxu0 0.0
    %900 = vmatprep.subr.mxu0 0.0
    %901 = vmatpush2.msra.mxu0 0.0
    %902 = vmatprep.subr.mxu0 0.0
    %903 = vmatpush2.msra.mxu0 0.0
    %904 = vmatprep.subr.mxu0 0.0
    %905 = vmatpush2.msra.mxu0 0.0
    %906 = vmatprep.subr.mxu0 0.0
    %907 = vmatpush2.msra.mxu0 0.0
    %908 = vmatprep.subr.mxu0 0.0
    %909 = vmatpush2.msra.mxu0 0.0
    %910 = vmatprep.subr.mxu0 0.0
    %911 = vmatpush2.msra.mxu0 0.0
    %912 = vmatprep.subr.mxu0 0.0
    %913 = vmatpush2.msra.mxu0 0.0
    %914 = vmatprep.subr.mxu0 0.0
    %915 = vmatpush2.msra.mxu0 0.0
    %916 = vmatprep.subr.mxu0 0.0
    %917 = vmatpush2.msra.mxu0 0.0
    %918 = vmatprep.subr.mxu0 0.0
    %919 = vmatpush2.msra.mxu0 0.0
    %920 = vmatprep.mubr.f32.mxu0 0.0
    %921 = vmatmul.mubr.f32.gmra.mxu0 %v649
    %v922 = vpop.f32.mrf.mxu0
    %v923 = vadd.f32 %v853, %v922
    %v924 = vpop.f32.mrf.mxu0
    %925 = vdwg.mxu0
    %v926 = vld [vmem:[%s9] sm:$0x1]
    %v928 = vlaneseq
    %v929 = vshrl.u32 %v928, 7
    %v930 = vsub.s32 0, %v929
    %v931 = vrot.slane %v926, %v930
    %v933 = vadd.f32 %v923, %v931
    %v934 = vxor.u32 %v933, 2147483648
    %v935 = vmul.f32 %v934, 1.442695
    %v936 = vpow.pop %v935
    %v937 = vadd.f32 %v936, 1.0
    %v938 = vrcp.pop %v937
    %v939 = vmul.f32 1.0, %v938
    %v940 = vmul.f32 %v933, %v939
    %v941 = vld [vmem:[%s10] sm:$0xff]
    %v942 = vld [vmem:[%s10 + $0x8] sm:$0xff]
    %v943 = vld [vmem:[%s10 + $0x10] sm:$0xff]
    %v944 = vld [vmem:[%s10 + $0x18] sm:$0xff]
    %v945 = vld [vmem:[%s11] sm:$0x1]
    %v947 = vlaneseq
    %v948 = vshrl.u32 %v947, 7
    %v949 = vsub.s32 0, %v948
    %v950 = vrot.slane %v945, %v949
    %v953 = vsel %vm465, %v940, 0
    %955 = vmatprep.subr.mxu0 0.0
    %956 = vmatpush1.msra.mxu0 0.0
    %957 = vmatprep.subr.mxu0 0.0
    %958 = vmatpush1.msra.mxu0 0.0
    %959 = vmatprep.subr.mxu0 0.0
    %960 = vmatpush1.msra.mxu0 0.0
    %961 = vmatprep.subr.mxu0 0.0
    %962 = vmatpush1.msra.mxu0 0.0
    %963 = vmatprep.subr.mxu0 0.0
    %964 = vmatpush1.msra.mxu0 0.0
    %965 = vmatprep.subr.mxu0 0.0
    %966 = vmatpush1.msra.mxu0 0.0
    %967 = vmatprep.subr.mxu0 0.0
    %968 = vmatpush1.msra.mxu0 0.0
    %969 = vmatprep.subr.mxu0 0.0
    %970 = vmatpush1.msra.mxu0 0.0
    %971 = vmatprep.subr.mxu0 0.0
    %972 = vmatpush1.msra.mxu0 0.0
    %973 = vmatprep.subr.mxu0 0.0
    %974 = vmatpush1.msra.mxu0 0.0
    %975 = vmatprep.subr.mxu0 0.0
    %976 = vmatpush1.msra.mxu0 0.0
    %977 = vmatprep.subr.mxu0 0.0
    %978 = vmatpush1.msra.mxu0 0.0
    %979 = vmatprep.subr.mxu0 0.0
    %980 = vmatpush1.msra.mxu0 %v944
    %981 = vmatprep.subr.mxu0 0.0
    %982 = vmatpush1.msra.mxu0 %v943
    %983 = vmatprep.subr.mxu0 0.0
    %984 = vmatpush1.msra.mxu0 %v942
    %985 = vmatprep.subr.mxu0 0.0
    %986 = vmatpush1.msra.mxu0 %v941
    %987 = vmatprep.subr.mxu0 0.0
    %988 = vmatpush2.msra.mxu0 0.0
    %989 = vmatprep.subr.mxu0 0.0
    %990 = vmatpush2.msra.mxu0 0.0
    %991 = vmatprep.subr.mxu0 0.0
    %992 = vmatpush2.msra.mxu0 0.0
    %993 = vmatprep.subr.mxu0 0.0
    %994 = vmatpush2.msra.mxu0 0.0
    %995 = vmatprep.subr.mxu0 0.0
    %996 = vmatpush2.msra.mxu0 0.0
    %997 = vmatprep.subr.mxu0 0.0
    %998 = vmatpush2.msra.mxu0 0.0
    %999 = vmatprep.subr.mxu0 0.0
    %1000 = vmatpush2.msra.mxu0 0.0
    %1001 = vmatprep.subr.mxu0 0.0
    %1002 = vmatpush2.msra.mxu0 0.0
    %1003 = vmatprep.subr.mxu0 0.0
    %1004 = vmatpush2.msra.mxu0 0.0
    %1005 = vmatprep.subr.mxu0 0.0
    %1006 = vmatpush2.msra.mxu0 0.0
    %1007 = vmatprep.subr.mxu0 0.0
    %1008 = vmatpush2.msra.mxu0 0.0
    %1009 = vmatprep.subr.mxu0 0.0
    %1010 = vmatpush2.msra.mxu0 0.0
    %1011 = vmatprep.subr.mxu0 0.0
    %1012 = vmatpush2.msra.mxu0 0.0
    %1013 = vmatprep.subr.mxu0 0.0
    %1014 = vmatpush2.msra.mxu0 0.0
    %1015 = vmatprep.subr.mxu0 0.0
    %1016 = vmatpush2.msra.mxu0 0.0
    %1017 = vmatprep.subr.mxu0 0.0
    %1018 = vmatpush2.msra.mxu0 0.0
    %1019 = vmatprep.mubr.f32.mxu0 0.0
    %1020 = vmatmul.mubr.f32.gmra.mxu0 %v953
    %v1021 = vpop.f32.mrf.mxu0
    %v1022 = vadd.f32 %v950, %v1021
    %v1023 = vpop.f32.mrf.mxu0
    %1024 = vdwg.mxu0
    %v1025 = vlaneseq
    %v1026 = vand.u32 %v1025, 127
    %v1027 = vld [vmem:[%s2] sm:$0x3]
    %1028 = vset.pattern.permute.xlu0 0
    %1029 = vperm.xlu0 %1028, %v1027
    %v1030 = vpop.permute.xlu0 %1029
    %vm1031 = vcmp.eq.s32.totalorder %v1030, %v1026
    %v1032 = vsel %vm1031, 1, 0
    %v1033 = vcvt.s32.f32 %v1032
    %v1034 = vld [vmem:[%s12] sm:$0xff]
    %v1035 = vld [vmem:[%s12 + $0x8] sm:$0x7]
    %vm1036 = vcmask 89088
    %v1038 = vsel %vm1036, %v1033, 0
    %vm1040 = vcmask 1042432
    %v1042 = vsel %vm1040, %v1035, 0
    %1044 = vmatprep.subr.mxu0 0.0
    %1045 = vmatpush1.msra.mxu0 0.0
    %1046 = vmatprep.subr.mxu0 0.0
    %1047 = vmatpush1.msra.mxu0 0.0
    %1048 = vmatprep.subr.mxu0 0.0
    %1049 = vmatpush1.msra.mxu0 0.0
    %1050 = vmatprep.subr.mxu0 0.0
    %1051 = vmatpush1.msra.mxu0 0.0
    %1052 = vmatprep.subr.mxu0 0.0
    %1053 = vmatpush1.msra.mxu0 0.0
    %1054 = vmatprep.subr.mxu0 0.0
    %1055 = vmatpush1.msra.mxu0 0.0
    %1056 = vmatprep.subr.mxu0 0.0
    %1057 = vmatpush1.msra.mxu0 0.0
    %1058 = vmatprep.subr.mxu0 0.0
    %1059 = vmatpush1.msra.mxu0 0.0
    %1060 = vmatprep.subr.mxu0 0.0
    %1061 = vmatpush1.msra.mxu0 0.0
    %1062 = vmatprep.subr.mxu0 0.0
    %1063 = vmatpush1.msra.mxu0 0.0
    %1064 = vmatprep.subr.mxu0 0.0
    %1065 = vmatpush1.msra.mxu0 0.0
    %1066 = vmatprep.subr.mxu0 0.0
    %1067 = vmatpush1.msra.mxu0 0.0
    %1068 = vmatprep.subr.mxu0 0.0
    %1069 = vmatpush1.msra.mxu0 0.0
    %1070 = vmatprep.subr.mxu0 0.0
    %1071 = vmatpush1.msra.mxu0 0.0
    %1072 = vmatprep.subr.mxu0 0.0
    %1073 = vmatpush1.msra.mxu0 %v1042
    %1074 = vmatprep.subr.mxu0 0.0
    %1075 = vmatpush1.msra.mxu0 %v1034
    %1076 = vmatprep.subr.mxu0 0.0
    %1077 = vmatpush2.msra.mxu0 0.0
    %1078 = vmatprep.subr.mxu0 0.0
    %1079 = vmatpush2.msra.mxu0 0.0
    %1080 = vmatprep.subr.mxu0 0.0
    %1081 = vmatpush2.msra.mxu0 0.0
    %1082 = vmatprep.subr.mxu0 0.0
    %1083 = vmatpush2.msra.mxu0 0.0
    %1084 = vmatprep.subr.mxu0 0.0
    %1085 = vmatpush2.msra.mxu0 0.0
    %1086 = vmatprep.subr.mxu0 0.0
    %1087 = vmatpush2.msra.mxu0 0.0
    %1088 = vmatprep.subr.mxu0 0.0
    %1089 = vmatpush2.msra.mxu0 0.0
    %1090 = vmatprep.subr.mxu0 0.0
    %1091 = vmatpush2.msra.mxu0 0.0
    %1092 = vmatprep.subr.mxu0 0.0
    %1093 = vmatpush2.msra.mxu0 0.0
    %1094 = vmatprep.subr.mxu0 0.0
    %1095 = vmatpush2.msra.mxu0 0.0
    %1096 = vmatprep.subr.mxu0 0.0
    %1097 = vmatpush2.msra.mxu0 0.0
    %1098 = vmatprep.subr.mxu0 0.0
    %1099 = vmatpush2.msra.mxu0 0.0
    %1100 = vmatprep.subr.mxu0 0.0
    %1101 = vmatpush2.msra.mxu0 0.0
    %1102 = vmatprep.subr.mxu0 0.0
    %1103 = vmatpush2.msra.mxu0 0.0
    %1104 = vmatprep.subr.mxu0 0.0
    %1105 = vmatpush2.msra.mxu0 0.0
    %1106 = vmatprep.subr.mxu0 0.0
    %1107 = vmatpush2.msra.mxu0 0.0
    %1108 = vmatprep.mubr.f32.mxu0 0.0
    %1109 = vmatmul.mubr.f32.gmra.mxu0 %v1038
    %v1110 = vpop.f32.mrf.mxu0
    %v1111 = vadd.f32 0.0, %v1110
    %v1112 = vpop.f32.mrf.mxu0
    %1113 = vdwg.mxu0
    %v1114 = vadd.f32 %v536, %v1022
    %v1115 = vadd.f32 %v1114, %v1111
    %vm1116 = vcmask 254976
    %1117 = vst.msk [vmem:[#allocation2] sm:$0x3] %vm1116, %v1115
    // Predicated region
    $region54: #{tpu_custom_call.1} parent=1 // pred_check
      _
    $region55: #{tpu_custom_call.1} parent=1 // pred_check_branch
      %1119 = sbr.rel (0) target = $region57
    $region56: #{tpu_custom_call.1} parent=1 // pred_region
      %s1121 = ssub.s32 32, 32
      %1122 = vsyncadd [#allocation3], %s1121
      %s1124 = sshll.u32 [#allocation2], 4
      %s1125 = int_to_ptr.vmem [resolvable:$true] %s1124
      %1127 = dma.vmem_to_hbm [thread:$0]  %s1125, 32, %s13, [#allocation3]
    $region57: #{tpu_custom_call.1} parent=1 // pred_fallthru
      _
    // Predicated region
    $region58: #{tpu_custom_call.1} parent=1 // pred_check
      _
    $region59: #{tpu_custom_call.1} parent=1 // pred_check_branch
      %1129 = sbr.rel (0) target = $region61
    $region60: #{tpu_custom_call.1} parent=1 // pred_region
      %1130 = dma.done [#allocation3], 32
    $region61: #{tpu_custom_call.1} parent=1 // pred_fallthru
      _
    %1131 = vsyncpa [#allocation3], 1

</llo_original>
